<compile_context>
chip_gen: v6e
topology: v6e:2x2x1
jax: 0.10.0
libtpu: 0.0.40
codegen_flags: <defaults>
</compile_context>

<pallas_src>
import functools

import jax
import jax.numpy as jnp
from jax.experimental import pallas as pl
from jax.experimental.pallas import tpu as pltpu

EPS = 1e-5  # torch.nn.InstanceNorm1d default eps


def _gat_layer(x, w_aug, bias_row, *, n_head, f_out, apply_elu):
    """One InstanceNorm + BatchMultiHeadGraphAttention layer for a single batch
    element, entirely in registers.  x: (n, f_in) f32 -> (n, n_head*f_out) f32."""
    n = x.shape[0]
    hf = n_head * f_out

    # InstanceNorm1d (affine=False): torch applies it on x.permute(0,2,1), i.e.
    # normalize over the node axis per feature (biased variance, eps=1e-5).
    mu = jnp.mean(x, axis=0, keepdims=True)
    var = jnp.mean((x - mu) ** 2, axis=0, keepdims=True)
    hn = (x - mu) * jax.lax.rsqrt(var + EPS)

    # Single wide MXU matmul: all heads' h' plus the folded-in attention
    # projections <h'_i, a_src[h]> and <h'_i, a_dst[h]>.
    # TODO(synk): cast hn / w_aug to bf16 here if n/f_in/f_out ever scale up
    # (v5e gains most); kept f32 at these tiny shapes for strict parity.
    hp_all = jnp.dot(hn, w_aug, preferred_element_type=jnp.float32)
    hp = hp_all[:, :hf]                                     # (n, hf), heads on lanes
    a_src = hp_all[:, hf:hf + n_head]                       # (n, n_head)
    a_dst_t = hp_all[:, hf + n_head:hf + 2 * n_head].T      # (n_head, n): one transpose for all heads

    # Stack heads on the SUBLANE axis so the softmax ops fire once, not n_head times.
    # TODO(synk): if n ever scales past ~1-2K, tile this flash-style over key
    # blocks instead of materializing (n_head*n, n) logits (v7x VMEM is 64 MiB).
    parts = [a_src[:, h:h + 1] + a_dst_t[h:h + 1, :] for h in range(n_head)]
    logits = parts[0] if n_head == 1 else jnp.concatenate(parts, axis=0)   # (n_head*n, n)
    logits = jnp.where(logits >= 0, logits, 0.2 * logits)   # LeakyReLU(0.2)
    m = jnp.max(logits, axis=-1, keepdims=True)
    e = jnp.exp(logits - m)
    inv = pl.reciprocal(jnp.sum(e, axis=-1, keepdims=True), approx=True)
    attn = e * inv                                           # softmax(dim=-1), all heads at once
    # TODO(synk): attention dropout omitted (inference semantics => identity).

    # Merge per-head outputs WITHOUT any lane-axis concatenate: matmul against
    # the full hp slab and keep only this head's columns (iota mask + add).
    if n_head == 1:
        out = jnp.dot(attn, hp, preferred_element_type=jnp.float32)
    else:
        col_ids = jax.lax.broadcasted_iota(jnp.int32, (n, hf), 1)
        out = jnp.zeros((n, hf), jnp.float32)
        for h in range(n_head):                              # static unroll (n_head tiny)
            prod = jnp.dot(attn[h * n:(h + 1) * n, :], hp,
                           preferred_element_type=jnp.float32)
            keep = (col_ids >= h * f_out) & (col_ids < (h + 1) * f_out)
            out = out + jnp.where(keep, prod, 0.0)

    out = out + bias_row
    if apply_elu:
        # Fused F.elu epilogue; clamp the exp argument so the unselected branch
        # cannot overflow to +inf (review's correctness note on debug inf checks).
        out = jnp.where(out > 0, out, jnp.exp(jnp.minimum(out, 0.0)) - 1.0)
    return out


def _gat_fused_kernel(x_ref, *wb_and_out, layer_cfgs, bs_blk):
    """All GAT layers for bs_blk batch elements in one program; the inter-layer
    activation never leaves vregs/VMEM (no HBM round trip between layers)."""
    out_ref = wb_and_out[-1]
    wb_refs = wb_and_out[:-1]
    n_layer = len(layer_cfgs)
    for b in range(bs_blk):                                  # static unroll (<= 2)
        h = x_ref[b].astype(jnp.float32)                     # (n, f_in)
        for li, (n_head, f_out) in enumerate(layer_cfgs):
            h = _gat_layer(h, wb_refs[2 * li][...], wb_refs[2 * li + 1][...],
                           n_head=n_head, f_out=f_out,
                           apply_elu=(li + 1 != n_layer))
        # NOTE: last dim (32) < 128 -> masked vst, but the whole block is 1-2
        # vregs; flattening to a >=128-lane slab would cost an in-kernel
        # relayout larger than the store it saves at these sizes.
        out_ref[b] = h.astype(out_ref.dtype)


def fuse_gat_params(params):
    """Hoisted OUT of the per-forward path (run once per parameter set):
    fold (W, a_src, a_dst) into one lane-dense slab [W_heads | W@a_src | W@a_dst]
    and tile the bias per head."""
    fused = []
    for (w, a_src, a_dst, bias) in params:
        n_head, f_in, f_out = w.shape
        hf = n_head * f_out
        w_flat = jnp.transpose(w, (1, 0, 2)).reshape(f_in, hf)      # column = h*f_out + o
        wa_src = jnp.einsum('hfo,ho->fh', w, a_src)                 # (f_in, n_head)
        wa_dst = jnp.einsum('hfo,ho->fh', w, a_dst)                 # (f_in, n_head)
        w_aug = jnp.concatenate([w_flat, wa_src, wa_dst], axis=1)   # (f_in, hf + 2*n_head)
        bias_fused = jnp.tile(bias, n_head).reshape(1, hf)
        fused.append((w_aug, bias_fused, n_head, f_out))
    return fused


def _batch_block(bs):
    """One grid step per TensorCore: split the batch 2-way on dual-core parts
    (v7x dual-TC, v4/v5p megacore); single grid step on single-TC v5e/v6e."""
    kind = ""
    try:
        kind = jax.devices()[0].device_kind.lower()
    except Exception:
        pass
    n_cores = 2 if any(tag in kind for tag in ("v7", "v5p", "v4")) else 1
    if n_cores > 1 and bs % n_cores == 0:
        return bs // n_cores
    return bs


def gat_forward(x, fused_params):
    """GAT.forward: ONE pallas_call covering every layer (InstanceNorm +
    multi-head graph attention + fused ELU between layers)."""
    bs, n, f_in = x.shape
    layer_cfgs = tuple((nh, fo) for (_, _, nh, fo) in fused_params)
    hf_last = layer_cfgs[-1][0] * layer_cfgs[-1][1]
    bs_blk = _batch_block(bs)

    wb_inputs = []
    in_specs = [pl.BlockSpec((bs_blk, n, f_in), lambda i: (i, 0, 0))]
    for (w_aug, bias_f, _, _) in fused_params:
        wb_inputs += [w_aug, bias_f]
        in_specs.append(pl.BlockSpec(w_aug.shape, lambda i: (0, 0)))
        in_specs.append(pl.BlockSpec(bias_f.shape, lambda i: (0, 0)))

    kernel = functools.partial(_gat_fused_kernel, layer_cfgs=layer_cfgs, bs_blk=bs_blk)
    return pl.pallas_call(
        kernel,
        out_shape=jax.ShapeDtypeStruct((bs, n, hf_last), x.dtype),
        grid_spec=pltpu.PrefetchScalarGridSpec(
            num_scalar_prefetch=0,
            grid=(bs // bs_blk,),
            in_specs=in_specs,
            out_specs=pl.BlockSpec((bs_blk, n, hf_last), lambda i: (i, 0, 0)),
        ),
        compiler_params=pltpu.CompilerParams(
            dimension_semantics=("parallel",)),
    )(x, *wb_inputs)


def init_gat_params(key, n_units, n_heads):
    """Deterministic xavier_uniform-style init (gain=1.414), zero bias."""
    params = []
    n_layer = len(n_units) - 1
    for i in range(n_layer):
        f_in = n_units[i] * n_heads[i - 1] if i else n_units[i]
        f_out = n_units[i + 1]
        nh = n_heads[i]
        key, k1, k2, k3 = jax.random.split(key, 4)
        gain = 1.414
        lim_w = gain * (6.0 / (f_in * f_out + nh * f_out)) ** 0.5
        w = jax.random.uniform(k1, (nh, f_in, f_out), jnp.float32, -lim_w, lim_w)
        lim_a = gain * (6.0 / (f_out + nh)) ** 0.5
        a_src = jax.random.uniform(k2, (nh, f_out), jnp.float32, -lim_a, lim_a)
        a_dst = jax.random.uniform(k3, (nh, f_out), jnp.float32, -lim_a, lim_a)
        bias = jnp.zeros((f_out,), jnp.float32)
        params.append((w, a_src, a_dst, bias))
    return params


def gat_reference(x, params):
    """Pure-JAX reference (mirrors the torch forward) for a sanity check."""
    bs, n = x.shape[:2]
    n_layer = len(params)
    for i, (w, a_src, a_dst, bias) in enumerate(params):
        mu = jnp.mean(x, axis=1, keepdims=True)
        var = jnp.mean((x - mu) ** 2, axis=1, keepdims=True)
        h = (x - mu) / jnp.sqrt(var + EPS)
        hp = jnp.einsum('bnf,hfo->bhno', h, w)
        asrc = jnp.einsum('bhno,ho->bhn', hp, a_src)[..., :, None]
        adst = jnp.einsum('bhno,ho->bhn', hp, a_dst)[..., None, :]
        logits = asrc + adst
        logits = jnp.where(logits >= 0, logits, 0.2 * logits)
        attn = jax.nn.softmax(logits, axis=-1)
        out = jnp.einsum('bhij,bhjo->bhio', attn, hp) + bias
        if i + 1 == n_layer:
            x = out[:, 0]
        else:
            x = jnp.transpose(out, (0, 2, 1, 3)).reshape(bs, n, -1)
            x = jnp.where(x > 0, x, jnp.exp(x) - 1.0)
    return x


if __name__ == "__main__":
    # GAT(n_units=[32, 16, 32], n_heads=[4, 1]) — matches norm_list([32, 64]).
    n_units = (32, 16, 32)
    n_heads = (4, 1)
    bs, n = 2, 8

    key = jax.random.PRNGKey(0)
    kx, kp = jax.random.split(key)
    x = jax.random.normal(kx, (bs, n, n_units[0]), jnp.float32)
    params = init_gat_params(kp, n_units, n_heads)

    # Weight fusion hoisted out of the forward path (done once, not per call).
    fused_params = fuse_gat_params(params)

    y = gat_forward(x, fused_params)
    y = jax.block_until_ready(y)

    y_ref = gat_reference(x, params)
    assert y.shape == (bs, n, n_units[-1]), y.shape
    # 1e-3 tolerance: kernel uses the EUP approximate reciprocal in softmax.
    assert bool(jnp.allclose(y, y_ref, atol=1e-3, rtol=1e-3)), "mismatch vs reference"
    print("KERNEL_OK")
</pallas_src>

<mosaic_0001>
module attributes {stable_mosaic.version = 11 : i64} {
  func.func @_gat_fused_kernel(%arg0: i32, %arg1: memref<2x8x32xf32, #tpu.memory_space<vmem>>, %arg2: memref<32x72xf32, #tpu.memory_space<vmem>>, %arg3: memref<1x64xf32, #tpu.memory_space<vmem>>, %arg4: memref<64x34xf32, #tpu.memory_space<vmem>>, %arg5: memref<1x32xf32, #tpu.memory_space<vmem>>, %arg6: memref<2x8x32xf32, #tpu.memory_space<vmem>>) attributes {dimension_semantics = [#tpu.dimension_semantics<parallel>], iteration_bounds = array<i64: 1>, scalar_prefetch = 0 : i64, scratch_operands = 0 : i64, tpu.core_type = #tpu.core_type<tc>, window_params = [{transform_indices = @transform_0, window_bounds = array<i64: 2, 8, 32>}, {pipeline_mode = #tpu.pipeline_mode<synchronous>, transform_indices = @transform_1, window_bounds = array<i64: 32, 72>}, {pipeline_mode = #tpu.pipeline_mode<synchronous>, transform_indices = @transform_2, window_bounds = array<i64: 1, 64>}, {pipeline_mode = #tpu.pipeline_mode<synchronous>, transform_indices = @transform_3, window_bounds = array<i64: 64, 34>}, {pipeline_mode = #tpu.pipeline_mode<synchronous>, transform_indices = @transform_4, window_bounds = array<i64: 1, 32>}, {transform_indices = @transform_5, window_bounds = array<i64: 2, 8, 32>}]} {
    %c0 = arith.constant 0 : index
    %c0_0 = arith.constant 0 : index
    %c0_1 = arith.constant 0 : index
    %0 = vector.load %arg1[%c0, %c0_0, %c0_1] : memref<2x8x32xf32, #tpu.memory_space<vmem>>, vector<1x8x32xf32>
    %1 = vector.shape_cast %0 : vector<1x8x32xf32> to vector<8x32xf32>
    %c0_2 = arith.constant 0 : index
    %c0_3 = arith.constant 0 : index
    %2 = vector.load %arg2[%c0_2, %c0_3] : memref<32x72xf32, #tpu.memory_space<vmem>>, vector<32x72xf32>
    %c0_4 = arith.constant 0 : index
    %c0_5 = arith.constant 0 : index
    %3 = vector.load %arg3[%c0_4, %c0_5] : memref<1x64xf32, #tpu.memory_space<vmem>>, vector<1x64xf32>
    %cst = arith.constant dense<0.000000e+00> : vector<32xf32>
    %4 = vector.multi_reduction <add>, %1, %cst [0] : vector<8x32xf32> to vector<32xf32>
    %5 = vector.shape_cast %4 : vector<32xf32> to vector<1x32xf32>
    %cst_6 = arith.constant 8.000000e+00 : f32
    %6 = vector.broadcast %cst_6 : f32 to vector<1x32xf32>
    %7 = arith.divf %5, %6 : vector<1x32xf32>
    %8 = vector.broadcast %7 : vector<1x32xf32> to vector<8x32xf32>
    %9 = arith.subf %1, %8 : vector<8x32xf32>
    %10 = arith.mulf %9, %9 : vector<8x32xf32>
    %cst_7 = arith.constant dense<0.000000e+00> : vector<32xf32>
    %11 = vector.multi_reduction <add>, %10, %cst_7 [0] : vector<8x32xf32> to vector<32xf32>
    %12 = vector.shape_cast %11 : vector<32xf32> to vector<1x32xf32>
    %cst_8 = arith.constant 8.000000e+00 : f32
    %13 = vector.broadcast %cst_8 : f32 to vector<1x32xf32>
    %14 = arith.divf %12, %13 : vector<1x32xf32>
    %15 = vector.broadcast %7 : vector<1x32xf32> to vector<8x32xf32>
    %16 = arith.subf %1, %15 : vector<8x32xf32>
    %cst_9 = arith.constant 9.99999974E-6 : f32
    %17 = vector.broadcast %cst_9 : f32 to vector<1x32xf32>
    %18 = arith.addf %14, %17 : vector<1x32xf32>
    %19 = math.rsqrt %18 : vector<1x32xf32>
    %20 = vector.broadcast %19 : vector<1x32xf32> to vector<8x32xf32>
    %21 = arith.mulf %16, %20 : vector<8x32xf32>
    %cst_10 = arith.constant dense<0.000000e+00> : vector<8x72xf32>
    %22 = tpu.matmul %21, %2, %cst_10 {dimension_numbers = #tpu.dot_dimension_numbers<[1], [0], [0], [1], [0, 0, 1, 1], [], []>} : vector<8x32xf32>, vector<32x72xf32>, vector<8x72xf32> -> vector<8x72xf32>
    %23 = vector.extract_strided_slice %22 {offsets = [0, 0], sizes = [8, 64], strides = [1, 1]} : vector<8x72xf32> to vector<8x64xf32>
    %24 = vector.extract_strided_slice %22 {offsets = [0, 64], sizes = [8, 4], strides = [1, 1]} : vector<8x72xf32> to vector<8x4xf32>
    %25 = vector.extract_strided_slice %22 {offsets = [0, 68], sizes = [8, 4], strides = [1, 1]} : vector<8x72xf32> to vector<8x4xf32>
    %26 = tpu.transpose %25, [1, 0] : vector<8x4xf32> -> vector<4x8xf32>
    %27 = vector.extract_strided_slice %24 {offsets = [0, 0], sizes = [8, 1], strides = [1, 1]} : vector<8x4xf32> to vector<8x1xf32>
    %28 = vector.extract_strided_slice %26 {offsets = [0, 0], sizes = [1, 8], strides = [1, 1]} : vector<4x8xf32> to vector<1x8xf32>
    %29 = vector.broadcast %27 : vector<8x1xf32> to vector<8x8xf32>
    %30 = vector.broadcast %28 : vector<1x8xf32> to vector<8x8xf32>
    %31 = arith.addf %29, %30 : vector<8x8xf32>
    %32 = vector.extract_strided_slice %24 {offsets = [0, 1], sizes = [8, 1], strides = [1, 1]} : vector<8x4xf32> to vector<8x1xf32>
    %33 = vector.extract_strided_slice %26 {offsets = [1, 0], sizes = [1, 8], strides = [1, 1]} : vector<4x8xf32> to vector<1x8xf32>
    %34 = vector.broadcast %32 : vector<8x1xf32> to vector<8x8xf32>
    %35 = vector.broadcast %33 : vector<1x8xf32> to vector<8x8xf32>
    %36 = arith.addf %34, %35 : vector<8x8xf32>
    %37 = vector.extract_strided_slice %24 {offsets = [0, 2], sizes = [8, 1], strides = [1, 1]} : vector<8x4xf32> to vector<8x1xf32>
    %38 = vector.extract_strided_slice %26 {offsets = [2, 0], sizes = [1, 8], strides = [1, 1]} : vector<4x8xf32> to vector<1x8xf32>
    %39 = vector.broadcast %37 : vector<8x1xf32> to vector<8x8xf32>
    %40 = vector.broadcast %38 : vector<1x8xf32> to vector<8x8xf32>
    %41 = arith.addf %39, %40 : vector<8x8xf32>
    %42 = vector.extract_strided_slice %24 {offsets = [0, 3], sizes = [8, 1], strides = [1, 1]} : vector<8x4xf32> to vector<8x1xf32>
    %43 = vector.extract_strided_slice %26 {offsets = [3, 0], sizes = [1, 8], strides = [1, 1]} : vector<4x8xf32> to vector<1x8xf32>
    %44 = vector.broadcast %42 : vector<8x1xf32> to vector<8x8xf32>
    %45 = vector.broadcast %43 : vector<1x8xf32> to vector<8x8xf32>
    %46 = arith.addf %44, %45 : vector<8x8xf32>
    %47 = tpu.concatenate %31, %36, %41, %46 in 0 : vector<8x8xf32>, vector<8x8xf32>, vector<8x8xf32>, vector<8x8xf32> -> vector<32x8xf32>
    %cst_11 = arith.constant 0.000000e+00 : f32
    %48 = vector.broadcast %cst_11 : f32 to vector<32x8xf32>
    %49 = arith.cmpf oge, %47, %48 : vector<32x8xf32>
    %cst_12 = arith.constant 2.000000e-01 : f32
    %50 = vector.broadcast %cst_12 : f32 to vector<32x8xf32>
    %51 = arith.mulf %50, %47 : vector<32x8xf32>
    %52 = arith.select %49, %47, %51 : vector<32x8xi1>, vector<32x8xf32>
    %cst_13 = arith.constant dense<0xFF800000> : vector<32xf32>
    %53 = vector.multi_reduction <maximumf>, %52, %cst_13 [1] : vector<32x8xf32> to vector<32xf32>
    %54 = vector.shape_cast %53 : vector<32xf32> to vector<32x1xf32>
    %55 = vector.broadcast %54 : vector<32x1xf32> to vector<32x8xf32>
    %56 = arith.subf %52, %55 : vector<32x8xf32>
    %57 = math.exp %56 : vector<32x8xf32>
    %cst_14 = arith.constant dense<0.000000e+00> : vector<32xf32>
    %58 = vector.multi_reduction <add>, %57, %cst_14 [1] : vector<32x8xf32> to vector<32xf32>
    %59 = vector.shape_cast %58 : vector<32xf32> to vector<32x1xf32>
    %60 = tpu.reciprocal %59 {approx = true} : vector<32x1xf32> -> vector<32x1xf32>
    %61 = vector.broadcast %60 : vector<32x1xf32> to vector<32x8xf32>
    %62 = arith.mulf %57, %61 : vector<32x8xf32>
    %63 = tpu.iota {dimensions = array<i32: 1>} : vector<8x64xi32>
    %cst_15 = arith.constant 0.000000e+00 : f32
    %64 = vector.broadcast %cst_15 : f32 to vector<8x64xf32>
    %65 = vector.extract_strided_slice %62 {offsets = [0, 0], sizes = [8, 8], strides = [1, 1]} : vector<32x8xf32> to vector<8x8xf32>
    %cst_16 = arith.constant dense<0.000000e+00> : vector<8x64xf32>
    %66 = tpu.matmul %65, %23, %cst_16 {dimension_numbers = #tpu.dot_dimension_numbers<[1], [0], [0], [1], [0, 0, 1, 1], [], []>} : vector<8x8xf32>, vector<8x64xf32>, vector<8x64xf32> -> vector<8x64xf32>
    %c0_i32 = arith.constant 0 : i32
    %67 = vector.broadcast %c0_i32 : i32 to vector<8x64xi32>
    %68 = arith.cmpi sge, %63, %67 : vector<8x64xi32>
    %c16_i32 = arith.constant 16 : i32
    %69 = vector.broadcast %c16_i32 : i32 to vector<8x64xi32>
    %70 = arith.cmpi slt, %63, %69 : vector<8x64xi32>
    %71 = arith.andi %68, %70 : vector<8x64xi1>
    %cst_17 = arith.constant 0.000000e+00 : f32
    %72 = vector.broadcast %cst_17 : f32 to vector<8x64xf32>
    %73 = arith.select %71, %66, %72 : vector<8x64xi1>, vector<8x64xf32>
    %74 = arith.addf %64, %73 : vector<8x64xf32>
    %75 = vector.extract_strided_slice %62 {offsets = [8, 0], sizes = [8, 8], strides = [1, 1]} : vector<32x8xf32> to vector<8x8xf32>
    %cst_18 = arith.constant dense<0.000000e+00> : vector<8x64xf32>
    %76 = tpu.matmul %75, %23, %cst_18 {dimension_numbers = #tpu.dot_dimension_numbers<[1], [0], [0], [1], [0, 0, 1, 1], [], []>} : vector<8x8xf32>, vector<8x64xf32>, vector<8x64xf32> -> vector<8x64xf32>
    %c16_i32_19 = arith.constant 16 : i32
    %77 = vector.broadcast %c16_i32_19 : i32 to vector<8x64xi32>
    %78 = arith.cmpi sge, %63, %77 : vector<8x64xi32>
    %c32_i32 = arith.constant 32 : i32
    %79 = vector.broadcast %c32_i32 : i32 to vector<8x64xi32>
    %80 = arith.cmpi slt, %63, %79 : vector<8x64xi32>
    %81 = arith.andi %78, %80 : vector<8x64xi1>
    %cst_20 = arith.constant 0.000000e+00 : f32
    %82 = vector.broadcast %cst_20 : f32 to vector<8x64xf32>
    %83 = arith.select %81, %76, %82 : vector<8x64xi1>, vector<8x64xf32>
    %84 = arith.addf %74, %83 : vector<8x64xf32>
    %85 = vector.extract_strided_slice %62 {offsets = [16, 0], sizes = [8, 8], strides = [1, 1]} : vector<32x8xf32> to vector<8x8xf32>
    %cst_21 = arith.constant dense<0.000000e+00> : vector<8x64xf32>
    %86 = tpu.matmul %85, %23, %cst_21 {dimension_numbers = #tpu.dot_dimension_numbers<[1], [0], [0], [1], [0, 0, 1, 1], [], []>} : vector<8x8xf32>, vector<8x64xf32>, vector<8x64xf32> -> vector<8x64xf32>
    %c32_i32_22 = arith.constant 32 : i32
    %87 = vector.broadcast %c32_i32_22 : i32 to vector<8x64xi32>
    %88 = arith.cmpi sge, %63, %87 : vector<8x64xi32>
    %c48_i32 = arith.constant 48 : i32
    %89 = vector.broadcast %c48_i32 : i32 to vector<8x64xi32>
    %90 = arith.cmpi slt, %63, %89 : vector<8x64xi32>
    %91 = arith.andi %88, %90 : vector<8x64xi1>
    %cst_23 = arith.constant 0.000000e+00 : f32
    %92 = vector.broadcast %cst_23 : f32 to vector<8x64xf32>
    %93 = arith.select %91, %86, %92 : vector<8x64xi1>, vector<8x64xf32>
    %94 = arith.addf %84, %93 : vector<8x64xf32>
    %95 = vector.extract_strided_slice %62 {offsets = [24, 0], sizes = [8, 8], strides = [1, 1]} : vector<32x8xf32> to vector<8x8xf32>
    %cst_24 = arith.constant dense<0.000000e+00> : vector<8x64xf32>
    %96 = tpu.matmul %95, %23, %cst_24 {dimension_numbers = #tpu.dot_dimension_numbers<[1], [0], [0], [1], [0, 0, 1, 1], [], []>} : vector<8x8xf32>, vector<8x64xf32>, vector<8x64xf32> -> vector<8x64xf32>
    %c48_i32_25 = arith.constant 48 : i32
    %97 = vector.broadcast %c48_i32_25 : i32 to vector<8x64xi32>
    %98 = arith.cmpi sge, %63, %97 : vector<8x64xi32>
    %c64_i32 = arith.constant 64 : i32
    %99 = vector.broadcast %c64_i32 : i32 to vector<8x64xi32>
    %100 = arith.cmpi slt, %63, %99 : vector<8x64xi32>
    %101 = arith.andi %98, %100 : vector<8x64xi1>
    %cst_26 = arith.constant 0.000000e+00 : f32
    %102 = vector.broadcast %cst_26 : f32 to vector<8x64xf32>
    %103 = arith.select %101, %96, %102 : vector<8x64xi1>, vector<8x64xf32>
    %104 = arith.addf %94, %103 : vector<8x64xf32>
    %105 = vector.broadcast %3 : vector<1x64xf32> to vector<8x64xf32>
    %106 = arith.addf %104, %105 : vector<8x64xf32>
    %cst_27 = arith.constant 0.000000e+00 : f32
    %107 = vector.broadcast %cst_27 : f32 to vector<8x64xf32>
    %108 = arith.cmpf ogt, %106, %107 : vector<8x64xf32>
    %cst_28 = arith.constant 0.000000e+00 : f32
    %109 = vector.broadcast %cst_28 : f32 to vector<8x64xf32>
    %110 = arith.minimumf %106, %109 : vector<8x64xf32>
    %111 = math.exp %110 : vector<8x64xf32>
    %cst_29 = arith.constant 1.000000e+00 : f32
    %112 = vector.broadcast %cst_29 : f32 to vector<8x64xf32>
    %113 = arith.subf %111, %112 : vector<8x64xf32>
    %114 = arith.select %108, %106, %113 : vector<8x64xi1>, vector<8x64xf32>
    %c0_30 = arith.constant 0 : index
    %c0_31 = arith.constant 0 : index
    %115 = vector.load %arg4[%c0_30, %c0_31] : memref<64x34xf32, #tpu.memory_space<vmem>>, vector<64x34xf32>
    %c0_32 = arith.constant 0 : index
    %c0_33 = arith.constant 0 : index
    %116 = vector.load %arg5[%c0_32, %c0_33] : memref<1x32xf32, #tpu.memory_space<vmem>>, vector<1x32xf32>
    %cst_34 = arith.constant dense<0.000000e+00> : vector<64xf32>
    %117 = vector.multi_reduction <add>, %114, %cst_34 [0] : vector<8x64xf32> to vector<64xf32>
    %118 = vector.shape_cast %117 : vector<64xf32> to vector<1x64xf32>
    %cst_35 = arith.constant 8.000000e+00 : f32
    %119 = vector.broadcast %cst_35 : f32 to vector<1x64xf32>
    %120 = arith.divf %118, %119 : vector<1x64xf32>
    %121 = vector.broadcast %120 : vector<1x64xf32> to vector<8x64xf32>
    %122 = arith.subf %114, %121 : vector<8x64xf32>
    %123 = arith.mulf %122, %122 : vector<8x64xf32>
    %cst_36 = arith.constant dense<0.000000e+00> : vector<64xf32>
    %124 = vector.multi_reduction <add>, %123, %cst_36 [0] : vector<8x64xf32> to vector<64xf32>
    %125 = vector.shape_cast %124 : vector<64xf32> to vector<1x64xf32>
    %cst_37 = arith.constant 8.000000e+00 : f32
    %126 = vector.broadcast %cst_37 : f32 to vector<1x64xf32>
    %127 = arith.divf %125, %126 : vector<1x64xf32>
    %128 = vector.broadcast %120 : vector<1x64xf32> to vector<8x64xf32>
    %129 = arith.subf %114, %128 : vector<8x64xf32>
    %cst_38 = arith.constant 9.99999974E-6 : f32
    %130 = vector.broadcast %cst_38 : f32 to vector<1x64xf32>
    %131 = arith.addf %127, %130 : vector<1x64xf32>
    %132 = math.rsqrt %131 : vector<1x64xf32>
    %133 = vector.broadcast %132 : vector<1x64xf32> to vector<8x64xf32>
    %134 = arith.mulf %129, %133 : vector<8x64xf32>
    %cst_39 = arith.constant dense<0.000000e+00> : vector<8x34xf32>
    %135 = tpu.matmul %134, %115, %cst_39 {dimension_numbers = #tpu.dot_dimension_numbers<[1], [0], [0], [1], [0, 0, 1, 1], [], []>} : vector<8x64xf32>, vector<64x34xf32>, vector<8x34xf32> -> vector<8x34xf32>
    %136 = vector.extract_strided_slice %135 {offsets = [0, 0], sizes = [8, 32], strides = [1, 1]} : vector<8x34xf32> to vector<8x32xf32>
    %137 = vector.extract_strided_slice %135 {offsets = [0, 32], sizes = [8, 1], strides = [1, 1]} : vector<8x34xf32> to vector<8x1xf32>
    %138 = vector.extract_strided_slice %135 {offsets = [0, 33], sizes = [8, 1], strides = [1, 1]} : vector<8x34xf32> to vector<8x1xf32>
    %139 = tpu.transpose %138, [1, 0] : vector<8x1xf32> -> vector<1x8xf32>
    %140 = vector.broadcast %137 : vector<8x1xf32> to vector<8x8xf32>
    %141 = vector.broadcast %139 : vector<1x8xf32> to vector<8x8xf32>
    %142 = arith.addf %140, %141 : vector<8x8xf32>
    %cst_40 = arith.constant 0.000000e+00 : f32
    %143 = vector.broadcast %cst_40 : f32 to vector<8x8xf32>
    %144 = arith.cmpf oge, %142, %143 : vector<8x8xf32>
    %cst_41 = arith.constant 2.000000e-01 : f32
    %145 = vector.broadcast %cst_41 : f32 to vector<8x8xf32>
    %146 = arith.mulf %145, %142 : vector<8x8xf32>
    %147 = arith.select %144, %142, %146 : vector<8x8xi1>, vector<8x8xf32>
    %cst_42 = arith.constant dense<0xFF800000> : vector<8xf32>
    %148 = vector.multi_reduction <maximumf>, %147, %cst_42 [1] : vector<8x8xf32> to vector<8xf32>
    %149 = vector.shape_cast %148 : vector<8xf32> to vector<8x1xf32>
    %150 = vector.broadcast %149 : vector<8x1xf32> to vector<8x8xf32>
    %151 = arith.subf %147, %150 : vector<8x8xf32>
    %152 = math.exp %151 : vector<8x8xf32>
    %cst_43 = arith.constant dense<0.000000e+00> : vector<8xf32>
    %153 = vector.multi_reduction <add>, %152, %cst_43 [1] : vector<8x8xf32> to vector<8xf32>
    %154 = vector.shape_cast %153 : vector<8xf32> to vector<8x1xf32>
    %155 = tpu.reciprocal %154 {approx = true} : vector<8x1xf32> -> vector<8x1xf32>
    %156 = vector.broadcast %155 : vector<8x1xf32> to vector<8x8xf32>
    %157 = arith.mulf %152, %156 : vector<8x8xf32>
    %cst_44 = arith.constant dense<0.000000e+00> : vector<8x32xf32>
    %158 = tpu.matmul %157, %136, %cst_44 {dimension_numbers = #tpu.dot_dimension_numbers<[1], [0], [0], [1], [0, 0, 1, 1], [], []>} : vector<8x8xf32>, vector<8x32xf32>, vector<8x32xf32> -> vector<8x32xf32>
    %159 = vector.broadcast %116 : vector<1x32xf32> to vector<8x32xf32>
    %160 = arith.addf %158, %159 : vector<8x32xf32>
    %c0_45 = arith.constant 0 : index
    %c0_46 = arith.constant 0 : index
    %c0_47 = arith.constant 0 : index
    %161 = vector.load %arg6[%c0_45, %c0_46, %c0_47] : memref<2x8x32xf32, #tpu.memory_space<vmem>>, vector<1x8x32xf32>
    %162 = vector.shape_cast %161 : vector<1x8x32xf32> to vector<8x32xf32>
    %163 = vector.shape_cast %160 : vector<8x32xf32> to vector<1x8x32xf32>
    tpu.vector_store %arg6[%c0_45, %c0_46, %c0_47], %163 {strides = array<i32>} : memref<2x8x32xf32, #tpu.memory_space<vmem>>, vector<1x8x32xf32>,
    %c1 = arith.constant 1 : index
    %c0_48 = arith.constant 0 : index
    %c0_49 = arith.constant 0 : index
    %164 = vector.load %arg1[%c1, %c0_48, %c0_49] : memref<2x8x32xf32, #tpu.memory_space<vmem>>, vector<1x8x32xf32>
    %165 = vector.shape_cast %164 : vector<1x8x32xf32> to vector<8x32xf32>
    %c0_50 = arith.constant 0 : index
    %c0_51 = arith.constant 0 : index
    %166 = vector.load %arg2[%c0_50, %c0_51] : memref<32x72xf32, #tpu.memory_space<vmem>>, vector<32x72xf32>
    %c0_52 = arith.constant 0 : index
    %c0_53 = arith.constant 0 : index
    %167 = vector.load %arg3[%c0_52, %c0_53] : memref<1x64xf32, #tpu.memory_space<vmem>>, vector<1x64xf32>
    %cst_54 = arith.constant dense<0.000000e+00> : vector<32xf32>
    %168 = vector.multi_reduction <add>, %165, %cst_54 [0] : vector<8x32xf32> to vector<32xf32>
    %169 = vector.shape_cast %168 : vector<32xf32> to vector<1x32xf32>
    %cst_55 = arith.constant 8.000000e+00 : f32
    %170 = vector.broadcast %cst_55 : f32 to vector<1x32xf32>
    %171 = arith.divf %169, %170 : vector<1x32xf32>
    %172 = vector.broadcast %171 : vector<1x32xf32> to vector<8x32xf32>
    %173 = arith.subf %165, %172 : vector<8x32xf32>
    %174 = arith.mulf %173, %173 : vector<8x32xf32>
    %cst_56 = arith.constant dense<0.000000e+00> : vector<32xf32>
    %175 = vector.multi_reduction <add>, %174, %cst_56 [0] : vector<8x32xf32> to vector<32xf32>
    %176 = vector.shape_cast %175 : vector<32xf32> to vector<1x32xf32>
    %cst_57 = arith.constant 8.000000e+00 : f32
    %177 = vector.broadcast %cst_57 : f32 to vector<1x32xf32>
    %178 = arith.divf %176, %177 : vector<1x32xf32>
    %179 = vector.broadcast %171 : vector<1x32xf32> to vector<8x32xf32>
    %180 = arith.subf %165, %179 : vector<8x32xf32>
    %cst_58 = arith.constant 9.99999974E-6 : f32
    %181 = vector.broadcast %cst_58 : f32 to vector<1x32xf32>
    %182 = arith.addf %178, %181 : vector<1x32xf32>
    %183 = math.rsqrt %182 : vector<1x32xf32>
    %184 = vector.broadcast %183 : vector<1x32xf32> to vector<8x32xf32>
    %185 = arith.mulf %180, %184 : vector<8x32xf32>
    %cst_59 = arith.constant dense<0.000000e+00> : vector<8x72xf32>
    %186 = tpu.matmul %185, %166, %cst_59 {dimension_numbers = #tpu.dot_dimension_numbers<[1], [0], [0], [1], [0, 0, 1, 1], [], []>} : vector<8x32xf32>, vector<32x72xf32>, vector<8x72xf32> -> vector<8x72xf32>
    %187 = vector.extract_strided_slice %186 {offsets = [0, 0], sizes = [8, 64], strides = [1, 1]} : vector<8x72xf32> to vector<8x64xf32>
    %188 = vector.extract_strided_slice %186 {offsets = [0, 64], sizes = [8, 4], strides = [1, 1]} : vector<8x72xf32> to vector<8x4xf32>
    %189 = vector.extract_strided_slice %186 {offsets = [0, 68], sizes = [8, 4], strides = [1, 1]} : vector<8x72xf32> to vector<8x4xf32>
    %190 = tpu.transpose %189, [1, 0] : vector<8x4xf32> -> vector<4x8xf32>
    %191 = vector.extract_strided_slice %188 {offsets = [0, 0], sizes = [8, 1], strides = [1, 1]} : vector<8x4xf32> to vector<8x1xf32>
    %192 = vector.extract_strided_slice %190 {offsets = [0, 0], sizes = [1, 8], strides = [1, 1]} : vector<4x8xf32> to vector<1x8xf32>
    %193 = vector.broadcast %191 : vector<8x1xf32> to vector<8x8xf32>
    %194 = vector.broadcast %192 : vector<1x8xf32> to vector<8x8xf32>
    %195 = arith.addf %193, %194 : vector<8x8xf32>
    %196 = vector.extract_strided_slice %188 {offsets = [0, 1], sizes = [8, 1], strides = [1, 1]} : vector<8x4xf32> to vector<8x1xf32>
    %197 = vector.extract_strided_slice %190 {offsets = [1, 0], sizes = [1, 8], strides = [1, 1]} : vector<4x8xf32> to vector<1x8xf32>
    %198 = vector.broadcast %196 : vector<8x1xf32> to vector<8x8xf32>
    %199 = vector.broadcast %197 : vector<1x8xf32> to vector<8x8xf32>
    %200 = arith.addf %198, %199 : vector<8x8xf32>
    %201 = vector.extract_strided_slice %188 {offsets = [0, 2], sizes = [8, 1], strides = [1, 1]} : vector<8x4xf32> to vector<8x1xf32>
    %202 = vector.extract_strided_slice %190 {offsets = [2, 0], sizes = [1, 8], strides = [1, 1]} : vector<4x8xf32> to vector<1x8xf32>
    %203 = vector.broadcast %201 : vector<8x1xf32> to vector<8x8xf32>
    %204 = vector.broadcast %202 : vector<1x8xf32> to vector<8x8xf32>
    %205 = arith.addf %203, %204 : vector<8x8xf32>
    %206 = vector.extract_strided_slice %188 {offsets = [0, 3], sizes = [8, 1], strides = [1, 1]} : vector<8x4xf32> to vector<8x1xf32>
    %207 = vector.extract_strided_slice %190 {offsets = [3, 0], sizes = [1, 8], strides = [1, 1]} : vector<4x8xf32> to vector<1x8xf32>
    %208 = vector.broadcast %206 : vector<8x1xf32> to vector<8x8xf32>
    %209 = vector.broadcast %207 : vector<1x8xf32> to vector<8x8xf32>
    %210 = arith.addf %208, %209 : vector<8x8xf32>
    %211 = tpu.concatenate %195, %200, %205, %210 in 0 : vector<8x8xf32>, vector<8x8xf32>, vector<8x8xf32>, vector<8x8xf32> -> vector<32x8xf32>
    %cst_60 = arith.constant 0.000000e+00 : f32
    %212 = vector.broadcast %cst_60 : f32 to vector<32x8xf32>
    %213 = arith.cmpf oge, %211, %212 : vector<32x8xf32>
    %cst_61 = arith.constant 2.000000e-01 : f32
    %214 = vector.broadcast %cst_61 : f32 to vector<32x8xf32>
    %215 = arith.mulf %214, %211 : vector<32x8xf32>
    %216 = arith.select %213, %211, %215 : vector<32x8xi1>, vector<32x8xf32>
    %cst_62 = arith.constant dense<0xFF800000> : vector<32xf32>
    %217 = vector.multi_reduction <maximumf>, %216, %cst_62 [1] : vector<32x8xf32> to vector<32xf32>
    %218 = vector.shape_cast %217 : vector<32xf32> to vector<32x1xf32>
    %219 = vector.broadcast %218 : vector<32x1xf32> to vector<32x8xf32>
    %220 = arith.subf %216, %219 : vector<32x8xf32>
    %221 = math.exp %220 : vector<32x8xf32>
    %cst_63 = arith.constant dense<0.000000e+00> : vector<32xf32>
    %222 = vector.multi_reduction <add>, %221, %cst_63 [1] : vector<32x8xf32> to vector<32xf32>
    %223 = vector.shape_cast %222 : vector<32xf32> to vector<32x1xf32>
    %224 = tpu.reciprocal %223 {approx = true} : vector<32x1xf32> -> vector<32x1xf32>
    %225 = vector.broadcast %224 : vector<32x1xf32> to vector<32x8xf32>
    %226 = arith.mulf %221, %225 : vector<32x8xf32>
    %227 = tpu.iota {dimensions = array<i32: 1>} : vector<8x64xi32>
    %cst_64 = arith.constant 0.000000e+00 : f32
    %228 = vector.broadcast %cst_64 : f32 to vector<8x64xf32>
    %229 = vector.extract_strided_slice %226 {offsets = [0, 0], sizes = [8, 8], strides = [1, 1]} : vector<32x8xf32> to vector<8x8xf32>
    %cst_65 = arith.constant dense<0.000000e+00> : vector<8x64xf32>
    %230 = tpu.matmul %229, %187, %cst_65 {dimension_numbers = #tpu.dot_dimension_numbers<[1], [0], [0], [1], [0, 0, 1, 1], [], []>} : vector<8x8xf32>, vector<8x64xf32>, vector<8x64xf32> -> vector<8x64xf32>
    %c0_i32_66 = arith.constant 0 : i32
    %231 = vector.broadcast %c0_i32_66 : i32 to vector<8x64xi32>
    %232 = arith.cmpi sge, %227, %231 : vector<8x64xi32>
    %c16_i32_67 = arith.constant 16 : i32
    %233 = vector.broadcast %c16_i32_67 : i32 to vector<8x64xi32>
    %234 = arith.cmpi slt, %227, %233 : vector<8x64xi32>
    %235 = arith.andi %232, %234 : vector<8x64xi1>
    %cst_68 = arith.constant 0.000000e+00 : f32
    %236 = vector.broadcast %cst_68 : f32 to vector<8x64xf32>
    %237 = arith.select %235, %230, %236 : vector<8x64xi1>, vector<8x64xf32>
    %238 = arith.addf %228, %237 : vector<8x64xf32>
    %239 = vector.extract_strided_slice %226 {offsets = [8, 0], sizes = [8, 8], strides = [1, 1]} : vector<32x8xf32> to vector<8x8xf32>
    %cst_69 = arith.constant dense<0.000000e+00> : vector<8x64xf32>
    %240 = tpu.matmul %239, %187, %cst_69 {dimension_numbers = #tpu.dot_dimension_numbers<[1], [0], [0], [1], [0, 0, 1, 1], [], []>} : vector<8x8xf32>, vector<8x64xf32>, vector<8x64xf32> -> vector<8x64xf32>
    %c16_i32_70 = arith.constant 16 : i32
    %241 = vector.broadcast %c16_i32_70 : i32 to vector<8x64xi32>
    %242 = arith.cmpi sge, %227, %241 : vector<8x64xi32>
    %c32_i32_71 = arith.constant 32 : i32
    %243 = vector.broadcast %c32_i32_71 : i32 to vector<8x64xi32>
    %244 = arith.cmpi slt, %227, %243 : vector<8x64xi32>
    %245 = arith.andi %242, %244 : vector<8x64xi1>
    %cst_72 = arith.constant 0.000000e+00 : f32
    %246 = vector.broadcast %cst_72 : f32 to vector<8x64xf32>
    %247 = arith.select %245, %240, %246 : vector<8x64xi1>, vector<8x64xf32>
    %248 = arith.addf %238, %247 : vector<8x64xf32>
    %249 = vector.extract_strided_slice %226 {offsets = [16, 0], sizes = [8, 8], strides = [1, 1]} : vector<32x8xf32> to vector<8x8xf32>
    %cst_73 = arith.constant dense<0.000000e+00> : vector<8x64xf32>
    %250 = tpu.matmul %249, %187, %cst_73 {dimension_numbers = #tpu.dot_dimension_numbers<[1], [0], [0], [1], [0, 0, 1, 1], [], []>} : vector<8x8xf32>, vector<8x64xf32>, vector<8x64xf32> -> vector<8x64xf32>
    %c32_i32_74 = arith.constant 32 : i32
    %251 = vector.broadcast %c32_i32_74 : i32 to vector<8x64xi32>
    %252 = arith.cmpi sge, %227, %251 : vector<8x64xi32>
    %c48_i32_75 = arith.constant 48 : i32
    %253 = vector.broadcast %c48_i32_75 : i32 to vector<8x64xi32>
    %254 = arith.cmpi slt, %227, %253 : vector<8x64xi32>
    %255 = arith.andi %252, %254 : vector<8x64xi1>
    %cst_76 = arith.constant 0.000000e+00 : f32
    %256 = vector.broadcast %cst_76 : f32 to vector<8x64xf32>
    %257 = arith.select %255, %250, %256 : vector<8x64xi1>, vector<8x64xf32>
    %258 = arith.addf %248, %257 : vector<8x64xf32>
    %259 = vector.extract_strided_slice %226 {offsets = [24, 0], sizes = [8, 8], strides = [1, 1]} : vector<32x8xf32> to vector<8x8xf32>
    %cst_77 = arith.constant dense<0.000000e+00> : vector<8x64xf32>
    %260 = tpu.matmul %259, %187, %cst_77 {dimension_numbers = #tpu.dot_dimension_numbers<[1], [0], [0], [1], [0, 0, 1, 1], [], []>} : vector<8x8xf32>, vector<8x64xf32>, vector<8x64xf32> -> vector<8x64xf32>
    %c48_i32_78 = arith.constant 48 : i32
    %261 = vector.broadcast %c48_i32_78 : i32 to vector<8x64xi32>
    %262 = arith.cmpi sge, %227, %261 : vector<8x64xi32>
    %c64_i32_79 = arith.constant 64 : i32
    %263 = vector.broadcast %c64_i32_79 : i32 to vector<8x64xi32>
    %264 = arith.cmpi slt, %227, %263 : vector<8x64xi32>
    %265 = arith.andi %262, %264 : vector<8x64xi1>
    %cst_80 = arith.constant 0.000000e+00 : f32
    %266 = vector.broadcast %cst_80 : f32 to vector<8x64xf32>
    %267 = arith.select %265, %260, %266 : vector<8x64xi1>, vector<8x64xf32>
    %268 = arith.addf %258, %267 : vector<8x64xf32>
    %269 = vector.broadcast %167 : vector<1x64xf32> to vector<8x64xf32>
    %270 = arith.addf %268, %269 : vector<8x64xf32>
    %cst_81 = arith.constant 0.000000e+00 : f32
    %271 = vector.broadcast %cst_81 : f32 to vector<8x64xf32>
    %272 = arith.cmpf ogt, %270, %271 : vector<8x64xf32>
    %cst_82 = arith.constant 0.000000e+00 : f32
    %273 = vector.broadcast %cst_82 : f32 to vector<8x64xf32>
    %274 = arith.minimumf %270, %273 : vector<8x64xf32>
    %275 = math.exp %274 : vector<8x64xf32>
    %cst_83 = arith.constant 1.000000e+00 : f32
    %276 = vector.broadcast %cst_83 : f32 to vector<8x64xf32>
    %277 = arith.subf %275, %276 : vector<8x64xf32>
    %278 = arith.select %272, %270, %277 : vector<8x64xi1>, vector<8x64xf32>
    %c0_84 = arith.constant 0 : index
    %c0_85 = arith.constant 0 : index
    %279 = vector.load %arg4[%c0_84, %c0_85] : memref<64x34xf32, #tpu.memory_space<vmem>>, vector<64x34xf32>
    %c0_86 = arith.constant 0 : index
    %c0_87 = arith.constant 0 : index
    %280 = vector.load %arg5[%c0_86, %c0_87] : memref<1x32xf32, #tpu.memory_space<vmem>>, vector<1x32xf32>
    %cst_88 = arith.constant dense<0.000000e+00> : vector<64xf32>
    %281 = vector.multi_reduction <add>, %278, %cst_88 [0] : vector<8x64xf32> to vector<64xf32>
    %282 = vector.shape_cast %281 : vector<64xf32> to vector<1x64xf32>
    %cst_89 = arith.constant 8.000000e+00 : f32
    %283 = vector.broadcast %cst_89 : f32 to vector<1x64xf32>
    %284 = arith.divf %282, %283 : vector<1x64xf32>
    %285 = vector.broadcast %284 : vector<1x64xf32> to vector<8x64xf32>
    %286 = arith.subf %278, %285 : vector<8x64xf32>
    %287 = arith.mulf %286, %286 : vector<8x64xf32>
    %cst_90 = arith.constant dense<0.000000e+00> : vector<64xf32>
    %288 = vector.multi_reduction <add>, %287, %cst_90 [0] : vector<8x64xf32> to vector<64xf32>
    %289 = vector.shape_cast %288 : vector<64xf32> to vector<1x64xf32>
    %cst_91 = arith.constant 8.000000e+00 : f32
    %290 = vector.broadcast %cst_91 : f32 to vector<1x64xf32>
    %291 = arith.divf %289, %290 : vector<1x64xf32>
    %292 = vector.broadcast %284 : vector<1x64xf32> to vector<8x64xf32>
    %293 = arith.subf %278, %292 : vector<8x64xf32>
    %cst_92 = arith.constant 9.99999974E-6 : f32
    %294 = vector.broadcast %cst_92 : f32 to vector<1x64xf32>
    %295 = arith.addf %291, %294 : vector<1x64xf32>
    %296 = math.rsqrt %295 : vector<1x64xf32>
    %297 = vector.broadcast %296 : vector<1x64xf32> to vector<8x64xf32>
    %298 = arith.mulf %293, %297 : vector<8x64xf32>
    %cst_93 = arith.constant dense<0.000000e+00> : vector<8x34xf32>
    %299 = tpu.matmul %298, %279, %cst_93 {dimension_numbers = #tpu.dot_dimension_numbers<[1], [0], [0], [1], [0, 0, 1, 1], [], []>} : vector<8x64xf32>, vector<64x34xf32>, vector<8x34xf32> -> vector<8x34xf32>
    %300 = vector.extract_strided_slice %299 {offsets = [0, 0], sizes = [8, 32], strides = [1, 1]} : vector<8x34xf32> to vector<8x32xf32>
    %301 = vector.extract_strided_slice %299 {offsets = [0, 32], sizes = [8, 1], strides = [1, 1]} : vector<8x34xf32> to vector<8x1xf32>
    %302 = vector.extract_strided_slice %299 {offsets = [0, 33], sizes = [8, 1], strides = [1, 1]} : vector<8x34xf32> to vector<8x1xf32>
    %303 = tpu.transpose %302, [1, 0] : vector<8x1xf32> -> vector<1x8xf32>
    %304 = vector.broadcast %301 : vector<8x1xf32> to vector<8x8xf32>
    %305 = vector.broadcast %303 : vector<1x8xf32> to vector<8x8xf32>
    %306 = arith.addf %304, %305 : vector<8x8xf32>
    %cst_94 = arith.constant 0.000000e+00 : f32
    %307 = vector.broadcast %cst_94 : f32 to vector<8x8xf32>
    %308 = arith.cmpf oge, %306, %307 : vector<8x8xf32>
    %cst_95 = arith.constant 2.000000e-01 : f32
    %309 = vector.broadcast %cst_95 : f32 to vector<8x8xf32>
    %310 = arith.mulf %309, %306 : vector<8x8xf32>
    %311 = arith.select %308, %306, %310 : vector<8x8xi1>, vector<8x8xf32>
    %cst_96 = arith.constant dense<0xFF800000> : vector<8xf32>
    %312 = vector.multi_reduction <maximumf>, %311, %cst_96 [1] : vector<8x8xf32> to vector<8xf32>
    %313 = vector.shape_cast %312 : vector<8xf32> to vector<8x1xf32>
    %314 = vector.broadcast %313 : vector<8x1xf32> to vector<8x8xf32>
    %315 = arith.subf %311, %314 : vector<8x8xf32>
    %316 = math.exp %315 : vector<8x8xf32>
    %cst_97 = arith.constant dense<0.000000e+00> : vector<8xf32>
    %317 = vector.multi_reduction <add>, %316, %cst_97 [1] : vector<8x8xf32> to vector<8xf32>
    %318 = vector.shape_cast %317 : vector<8xf32> to vector<8x1xf32>
    %319 = tpu.reciprocal %318 {approx = true} : vector<8x1xf32> -> vector<8x1xf32>
    %320 = vector.broadcast %319 : vector<8x1xf32> to vector<8x8xf32>
    %321 = arith.mulf %316, %320 : vector<8x8xf32>
    %cst_98 = arith.constant dense<0.000000e+00> : vector<8x32xf32>
    %322 = tpu.matmul %321, %300, %cst_98 {dimension_numbers = #tpu.dot_dimension_numbers<[1], [0], [0], [1], [0, 0, 1, 1], [], []>} : vector<8x8xf32>, vector<8x32xf32>, vector<8x32xf32> -> vector<8x32xf32>
    %323 = vector.broadcast %280 : vector<1x32xf32> to vector<8x32xf32>
    %324 = arith.addf %322, %323 : vector<8x32xf32>
    %c1_99 = arith.constant 1 : index
    %c0_100 = arith.constant 0 : index
    %c0_101 = arith.constant 0 : index
    %325 = vector.load %arg6[%c1_99, %c0_100, %c0_101] : memref<2x8x32xf32, #tpu.memory_space<vmem>>, vector<1x8x32xf32>
    %326 = vector.shape_cast %325 : vector<1x8x32xf32> to vector<8x32xf32>
    %327 = vector.shape_cast %324 : vector<8x32xf32> to vector<1x8x32xf32>
    tpu.vector_store %arg6[%c1_99, %c0_100, %c0_101], %327 {strides = array<i32>} : memref<2x8x32xf32, #tpu.memory_space<vmem>>, vector<1x8x32xf32>,
    return
  }
  func.func @transform_0(%arg0: i32) -> (i32, i32, i32) {
    %c0_i32 = arith.constant 0 : i32
    %c0_i32_0 = arith.constant 0 : i32
    %c0_i32_1 = arith.constant 0 : i32
    return %arg0, %c0_i32, %c0_i32_0 : i32, i32, i32
  }
  func.func @transform_1(%arg0: i32) -> (i32, i32) {
    %c0_i32 = arith.constant 0 : i32
    %c0_i32_0 = arith.constant 0 : i32
    %c0_i32_1 = arith.constant 0 : i32
    return %c0_i32, %c0_i32_0 : i32, i32
  }
  func.func @transform_2(%arg0: i32) -> (i32, i32) {
    %c0_i32 = arith.constant 0 : i32
    %c0_i32_0 = arith.constant 0 : i32
    %c0_i32_1 = arith.constant 0 : i32
    return %c0_i32, %c0_i32_0 : i32, i32
  }
  func.func @transform_3(%arg0: i32) -> (i32, i32) {
    %c0_i32 = arith.constant 0 : i32
    %c0_i32_0 = arith.constant 0 : i32
    %c0_i32_1 = arith.constant 0 : i32
    return %c0_i32, %c0_i32_0 : i32, i32
  }
  func.func @transform_4(%arg0: i32) -> (i32, i32) {
    %c0_i32 = arith.constant 0 : i32
    %c0_i32_0 = arith.constant 0 : i32
    %c0_i32_1 = arith.constant 0 : i32
    return %c0_i32, %c0_i32_0 : i32, i32
  }
  func.func @transform_5(%arg0: i32) -> (i32, i32, i32) {
    %c0_i32 = arith.constant 0 : i32
    %c0_i32_0 = arith.constant 0 : i32
    %c0_i32_1 = arith.constant 0 : i32
    return %arg0, %c0_i32, %c0_i32_0 : i32, i32, i32
  }
}

</mosaic_0001>

<llo_original>
// kernel: tpu_custom_call.1
$region0: #{tpu_custom_call.1}
  #allocation0 [shape = 'u32[]', space=smem, size = 0x4, offset = 0x4, fixed_abs, tag = 'smem constant byte address 0x4 - core index']
  #allocation1 [shape = 'u32[144,128]{1,0:T(1,128)}', space=vmem, size = 0x12000, scoped, tag = 'internal scratch']
  %s0 = inlined_call_operand.vmem [shape: f32[2,8,32], index: 0, kind: input, shape index: {}]
  %s1 = inlined_call_operand.vmem [shape: f32[32,72], index: 1, kind: input, shape index: {}]
  %s2 = inlined_call_operand.vmem [shape: f32[1,64], index: 2, kind: input, shape index: {}]
  %s3 = inlined_call_operand.vmem [shape: f32[64,34], index: 3, kind: input, shape index: {}]
  %s4 = inlined_call_operand.vmem [shape: f32[1,32], index: 4, kind: input, shape index: {}]
  %s5 = inlined_call_operand.hbm [shape: f32[2,8,32], index: 5, kind: output, shape index: {}]
  %s6 = sld [smem:[#allocation0]]
  $region30: #{tpu_custom_call.1} parent=0
    _
  %s8 = ssub.s32 1, %s6
  %s9 = scalar_select 0, %s8, %s6
  $region1: #{tpu_custom_call.1} parent=0
    #allocation2 [shape = 'u8[8192]{0}', space=vmem, size = 0x2000, scoped, tag = 'output window, operand 0, single buffered']
    #allocation3 [shape = 's32[1]{0}', space=sflag, size = 0x4, scoped, tag = 'scoped memory for tpu_custom_call.1']
    %10 = vsyncpa [#allocation3], 0
    // Predicated region
    $region2: #{tpu_custom_call.1} parent=1 // pred_check
      _
    $region3: #{tpu_custom_call.1} parent=1 // pred_check_branch
      %12 = sbr.rel (0) target = $region5
    $region4: #{tpu_custom_call.1} parent=1 // pred_region
      _
    $region5: #{tpu_custom_call.1} parent=1 // pred_fallthru
      _
    // Predicated region
    $region6: #{tpu_custom_call.1} parent=1 // pred_check
      _
    $region7: #{tpu_custom_call.1} parent=1 // pred_check_branch
      %14 = sbr.rel (0) target = $region9
    $region8: #{tpu_custom_call.1} parent=1 // pred_region
      _
    $region9: #{tpu_custom_call.1} parent=1 // pred_fallthru
      _
    // Predicated region
    $region10: #{tpu_custom_call.1} parent=1 // pred_check
      _
    $region11: #{tpu_custom_call.1} parent=1 // pred_check_branch
      %16 = sbr.rel (0) target = $region13
    $region12: #{tpu_custom_call.1} parent=1 // pred_region
      _
    $region13: #{tpu_custom_call.1} parent=1 // pred_fallthru
      _
    // Predicated region
    $region14: #{tpu_custom_call.1} parent=1 // pred_check
      _
    $region15: #{tpu_custom_call.1} parent=1 // pred_check_branch
      %18 = sbr.rel (0) target = $region17
    $region16: #{tpu_custom_call.1} parent=1 // pred_region
      _
    $region17: #{tpu_custom_call.1} parent=1 // pred_fallthru
      _
    // Predicated region
    $region18: #{tpu_custom_call.1} parent=1 // pred_check
      _
    $region19: #{tpu_custom_call.1} parent=1 // pred_check_branch
      %20 = sbr.rel (0) target = $region21
    $region20: #{tpu_custom_call.1} parent=1 // pred_region
      _
    $region21: #{tpu_custom_call.1} parent=1 // pred_fallthru
      _
    %v21 = vld [vmem:[%s0] sm:$0xff]
    %v22 = vld [vmem:[%s1] sm:$0xff]
    %v23 = vld [vmem:[%s1 + $0x8] sm:$0xff]
    %v24 = vld [vmem:[%s1 + $0x10] sm:$0xff]
    %v25 = vld [vmem:[%s1 + $0x18] sm:$0xff]
    %v26 = vld [vmem:[%s2] sm:$0x1]
    %vm27 = vcmask 261120
    %v28 = vsel %vm27, %v21, 0.0
    %v29 = vrot.slane %v28, 4
    %v30 = vadd.f32 %v28, %v29
    %v31 = vrot.slane %v30, 2
    %v32 = vadd.f32 %v30, %v31
    %v33 = vrot.slane %v32, 1
    %v34 = vadd.f32 %v32, %v33
    %v35 = vrcp.pop 8.0
    %v36 = vmul.f32 %v34, %v35
    %v37 = vsub.f32 %v21, %v36
    %v38 = vmul.f32 %v37, %v37
    %v39 = vsel %vm27, %v38, 0.0
    %v40 = vrot.slane %v39, 4
    %v41 = vadd.f32 %v39, %v40
    %v42 = vrot.slane %v41, 2
    %v43 = vadd.f32 %v41, %v42
    %v44 = vrot.slane %v43, 1
    %v45 = vadd.f32 %v43, %v44
    %v46 = vmul.f32 %v45, %v35
    %v47 = vadd.f32 %v46, 1e-05
    %v48 = vrsqrt.pop %v47
    %v49 = vmul.f32 %v37, %v48
    %v51 = vsel %vm27, %v49, 0
    %53 = vmatprep.subr.mxu0 0.0
    %54 = vmatpush1.msra.mxu0 0.0
    %55 = vmatprep.subr.mxu0 0.0
    %56 = vmatpush1.msra.mxu0 0.0
    %57 = vmatprep.subr.mxu0 0.0
    %58 = vmatpush1.msra.mxu0 0.0
    %59 = vmatprep.subr.mxu0 0.0
    %60 = vmatpush1.msra.mxu0 0.0
    %61 = vmatprep.subr.mxu0 0.0
    %62 = vmatpush1.msra.mxu0 0.0
    %63 = vmatprep.subr.mxu0 0.0
    %64 = vmatpush1.msra.mxu0 0.0
    %65 = vmatprep.subr.mxu0 0.0
    %66 = vmatpush1.msra.mxu0 0.0
    %67 = vmatprep.subr.mxu0 0.0
    %68 = vmatpush1.msra.mxu0 0.0
    %69 = vmatprep.subr.mxu0 0.0
    %70 = vmatpush1.msra.mxu0 0.0
    %71 = vmatprep.subr.mxu0 0.0
    %72 = vmatpush1.msra.mxu0 0.0
    %73 = vmatprep.subr.mxu0 0.0
    %74 = vmatpush1.msra.mxu0 0.0
    %75 = vmatprep.subr.mxu0 0.0
    %76 = vmatpush1.msra.mxu0 0.0
    %77 = vmatprep.subr.mxu0 0.0
    %78 = vmatpush1.msra.mxu0 %v25
    %79 = vmatprep.subr.mxu0 0.0
    %80 = vmatpush1.msra.mxu0 %v24
    %81 = vmatprep.subr.mxu0 0.0
    %82 = vmatpush1.msra.mxu0 %v23
    %83 = vmatprep.subr.mxu0 0.0
    %84 = vmatpush1.msra.mxu0 %v22
    %85 = vmatprep.subr.mxu0 0.0
    %86 = vmatpush2.msra.mxu0 0.0
    %87 = vmatprep.subr.mxu0 0.0
    %88 = vmatpush2.msra.mxu0 0.0
    %89 = vmatprep.subr.mxu0 0.0
    %90 = vmatpush2.msra.mxu0 0.0
    %91 = vmatprep.subr.mxu0 0.0
    %92 = vmatpush2.msra.mxu0 0.0
    %93 = vmatprep.subr.mxu0 0.0
    %94 = vmatpush2.msra.mxu0 0.0
    %95 = vmatprep.subr.mxu0 0.0
    %96 = vmatpush2.msra.mxu0 0.0
    %97 = vmatprep.subr.mxu0 0.0
    %98 = vmatpush2.msra.mxu0 0.0
    %99 = vmatprep.subr.mxu0 0.0
    %100 = vmatpush2.msra.mxu0 0.0
    %101 = vmatprep.subr.mxu0 0.0
    %102 = vmatpush2.msra.mxu0 0.0
    %103 = vmatprep.subr.mxu0 0.0
    %104 = vmatpush2.msra.mxu0 0.0
    %105 = vmatprep.subr.mxu0 0.0
    %106 = vmatpush2.msra.mxu0 0.0
    %107 = vmatprep.subr.mxu0 0.0
    %108 = vmatpush2.msra.mxu0 0.0
    %109 = vmatprep.subr.mxu0 0.0
    %110 = vmatpush2.msra.mxu0 0.0
    %111 = vmatprep.subr.mxu0 0.0
    %112 = vmatpush2.msra.mxu0 0.0
    %113 = vmatprep.subr.mxu0 0.0
    %114 = vmatpush2.msra.mxu0 0.0
    %115 = vmatprep.subr.mxu0 0.0
    %116 = vmatpush2.msra.mxu0 0.0
    %117 = vmatprep.mubr.f32.mxu0 0.0
    %118 = vmatmul.mubr.f32.gmra.mxu0 %v51
    %v119 = vpop.f32.mrf.mxu0
    %v120 = vadd.f32 0.0, %v119
    %v121 = vpop.f32.mrf.mxu0
    %122 = vdwg.mxu0
    %124 = vrot.lane.b32.xlu0 %v120, 60
    %v125 = vpop.permute.xlu0 %124
    %127 = vxpose.xlu0.b32.start [1/16] %v125, 128
    %128 = vxpose.xlu0.b32.cont [2/16] 0.0, 128
    %129 = vxpose.xlu0.b32.cont [3/16] 0.0, 128
    %130 = vxpose.xlu0.b32.cont [4/16] 0.0, 128
    %131 = vxpose.xlu0.b32.cont [5/16] 0.0, 128
    %132 = vxpose.xlu0.b32.cont [6/16] 0.0, 128
    %133 = vxpose.xlu0.b32.cont [7/16] 0.0, 128
    %134 = vxpose.xlu0.b32.cont [8/16] 0.0, 128
    %135 = vxpose.xlu0.b32.cont [9/16] 0.0, 128
    %136 = vxpose.xlu0.b32.cont [10/16] 0.0, 128
    %137 = vxpose.xlu0.b32.cont [11/16] 0.0, 128
    %138 = vxpose.xlu0.b32.cont [12/16] 0.0, 128
    %139 = vxpose.xlu0.b32.cont [13/16] 0.0, 128
    %140 = vxpose.xlu0.b32.cont [14/16] 0.0, 128
    %141 = vxpose.xlu0.b32.cont [15/16] 0.0, 128
    %142 = vxpose.xlu0.b32.end [16/16] 0.0, 128
    %v143 = vpop.trf.xlu0
    %v144 = vpop.trf.xlu0
    %v145 = vpop.trf.xlu0
    %v146 = vpop.trf.xlu0
    %v147 = vpop.trf.xlu0
    %v148 = vpop.trf.xlu0
    %v149 = vpop.trf.xlu0
    %v150 = vpop.trf.xlu0
    %v151 = vpop.trf.xlu0
    %v152 = vpop.trf.xlu0
    %v153 = vpop.trf.xlu0
    %v154 = vpop.trf.xlu0
    %v155 = vpop.trf.xlu0
    %v156 = vpop.trf.xlu0
    %v157 = vpop.trf.xlu0
    %v158 = vpop.trf.xlu0
    %159 = vset.pattern.permute.xlu0 64
    %160 = vperm.xlu0 %159, %v120
    %v161 = vpop.permute.xlu0 %160
    %v163 = vlaneseq
    %v164 = vshrl.u32 %v163, 7
    %v165 = vsub.s32 0, %v164
    %v166 = vrot.slane %v143, %v165
    %v167 = vadd.f32 %v161, %v166
    %168 = vset.pattern.permute.xlu0 65
    %169 = vperm.xlu0 %168, %v120
    %v170 = vpop.permute.xlu0 %169
    %v172 = vlaneseq
    %v173 = vshrl.u32 %v172, 7
    %v174 = vsub.s32 1, %v173
    %v175 = vrot.slane %v143, %v174
    %v176 = vadd.f32 %v170, %v175
    %177 = vset.pattern.permute.xlu0 66
    %178 = vperm.xlu0 %177, %v120
    %v179 = vpop.permute.xlu0 %178
    %v181 = vlaneseq
    %v182 = vshrl.u32 %v181, 7
    %v183 = vsub.s32 2, %v182
    %v184 = vrot.slane %v143, %v183
    %v185 = vadd.f32 %v179, %v184
    %186 = vset.pattern.permute.xlu0 67
    %187 = vperm.xlu0 %186, %v120
    %v188 = vpop.permute.xlu0 %187
    %v190 = vlaneseq
    %v191 = vshrl.u32 %v190, 7
    %v192 = vsub.s32 3, %v191
    %v193 = vrot.slane %v143, %v192
    %v194 = vadd.f32 %v188, %v193
    %vm195 = vcmp.ge.f32.partialorder %v167, 0.0
    %vm196 = vcmp.ge.f32.partialorder %v176, 0.0
    %vm197 = vcmp.ge.f32.partialorder %v185, 0.0
    %vm198 = vcmp.ge.f32.partialorder %v194, 0.0
    %v199 = vmul.f32 %v167, 0.2
    %v200 = vmul.f32 %v176, 0.2
    %v201 = vmul.f32 %v185, 0.2
    %v202 = vmul.f32 %v194, 0.2
    %v203 = vsel %vm195, %v167, %v199
    %v204 = vsel %vm196, %v176, %v200
    %v205 = vsel %vm197, %v185, %v201
    %v206 = vsel %vm198, %v194, %v202
    %vm207 = vcmask 64512
    %v208 = vsel %vm207, %v203, -inf
    %209 = vmax.xlane.f32.xlu0 %v208
    %v210 = vpop.xlane.xlu0 %209
    %v211 = vsel %vm207, %v204, -inf
    %212 = vmax.xlane.f32.xlu0 %v211
    %v213 = vpop.xlane.xlu0 %212
    %v214 = vsel %vm207, %v205, -inf
    %215 = vmax.xlane.f32.xlu0 %v214
    %v216 = vpop.xlane.xlu0 %215
    %v217 = vsel %vm207, %v206, -inf
    %218 = vmax.xlane.f32.xlu0 %v217
    %v219 = vpop.xlane.xlu0 %218
    %v220 = vsub.f32 %v203, %v210
    %v221 = vsub.f32 %v204, %v213
    %v222 = vsub.f32 %v205, %v216
    %v223 = vsub.f32 %v206, %v219
    %v224 = vmul.f32 %v220, 1.442695
    %v225 = vpow.pop %v224
    %v226 = vmul.f32 %v221, 1.442695
    %v227 = vpow.pop %v226
    %v228 = vmul.f32 %v222, 1.442695
    %v229 = vpow.pop %v228
    %v230 = vmul.f32 %v223, 1.442695
    %v231 = vpow.pop %v230
    %v232 = vsel %vm207, %v225, 0.0
    %233 = vadd.xlane.f32.xlu0 %v232
    %v234 = vpop.xlane.xlu0 %233
    %v235 = vsel %vm207, %v227, 0.0
    %236 = vadd.xlane.f32.xlu0 %v235
    %v237 = vpop.xlane.xlu0 %236
    %v238 = vsel %vm207, %v229, 0.0
    %239 = vadd.xlane.f32.xlu0 %v238
    %v240 = vpop.xlane.xlu0 %239
    %v241 = vsel %vm207, %v231, 0.0
    %242 = vadd.xlane.f32.xlu0 %v241
    %v243 = vpop.xlane.xlu0 %242
    %v244 = vrcp.pop %v234
    %v245 = vrcp.pop %v237
    %v246 = vrcp.pop %v240
    %v247 = vrcp.pop %v243
    %v248 = vmul.f32 %v225, %v244
    %v249 = vmul.f32 %v227, %v245
    %v250 = vmul.f32 %v229, %v246
    %v251 = vmul.f32 %v231, %v247
    %v252 = vlaneseq
    %v253 = vand.u32 %v252, 127
    %v255 = vsel %vm207, %v248, 0
    %257 = vmatprep.subr.mxu0 0.0
    %258 = vmatpush1.msra.mxu0 0.0
    %259 = vmatprep.subr.mxu0 0.0
    %260 = vmatpush1.msra.mxu0 0.0
    %261 = vmatprep.subr.mxu0 0.0
    %262 = vmatpush1.msra.mxu0 0.0
    %263 = vmatprep.subr.mxu0 0.0
    %264 = vmatpush1.msra.mxu0 0.0
    %265 = vmatprep.subr.mxu0 0.0
    %266 = vmatpush1.msra.mxu0 0.0
    %267 = vmatprep.subr.mxu0 0.0
    %268 = vmatpush1.msra.mxu0 0.0
    %269 = vmatprep.subr.mxu0 0.0
    %270 = vmatpush1.msra.mxu0 0.0
    %271 = vmatprep.subr.mxu0 0.0
    %272 = vmatpush1.msra.mxu0 0.0
    %273 = vmatprep.subr.mxu0 0.0
    %274 = vmatpush1.msra.mxu0 0.0
    %275 = vmatprep.subr.mxu0 0.0
    %276 = vmatpush1.msra.mxu0 0.0
    %277 = vmatprep.subr.mxu0 0.0
    %278 = vmatpush1.msra.mxu0 0.0
    %279 = vmatprep.subr.mxu0 0.0
    %280 = vmatpush1.msra.mxu0 0.0
    %281 = vmatprep.subr.mxu0 0.0
    %282 = vmatpush1.msra.mxu0 0.0
    %283 = vmatprep.subr.mxu0 0.0
    %284 = vmatpush1.msra.mxu0 0.0
    %285 = vmatprep.subr.mxu0 0.0
    %286 = vmatpush1.msra.mxu0 0.0
    %287 = vmatprep.subr.mxu0 0.0
    %288 = vmatpush1.msra.mxu0 %v120
    %289 = vmatprep.subr.mxu0 0.0
    %290 = vmatpush2.msra.mxu0 0.0
    %291 = vmatprep.subr.mxu0 0.0
    %292 = vmatpush2.msra.mxu0 0.0
    %293 = vmatprep.subr.mxu0 0.0
    %294 = vmatpush2.msra.mxu0 0.0
    %295 = vmatprep.subr.mxu0 0.0
    %296 = vmatpush2.msra.mxu0 0.0
    %297 = vmatprep.subr.mxu0 0.0
    %298 = vmatpush2.msra.mxu0 0.0
    %299 = vmatprep.subr.mxu0 0.0
    %300 = vmatpush2.msra.mxu0 0.0
    %301 = vmatprep.subr.mxu0 0.0
    %302 = vmatpush2.msra.mxu0 0.0
    %303 = vmatprep.subr.mxu0 0.0
    %304 = vmatpush2.msra.mxu0 0.0
    %305 = vmatprep.subr.mxu0 0.0
    %306 = vmatpush2.msra.mxu0 0.0
    %307 = vmatprep.subr.mxu0 0.0
    %308 = vmatpush2.msra.mxu0 0.0
    %309 = vmatprep.subr.mxu0 0.0
    %310 = vmatpush2.msra.mxu0 0.0
    %311 = vmatprep.subr.mxu0 0.0
    %312 = vmatpush2.msra.mxu0 0.0
    %313 = vmatprep.subr.mxu0 0.0
    %314 = vmatpush2.msra.mxu0 0.0
    %315 = vmatprep.subr.mxu0 0.0
    %316 = vmatpush2.msra.mxu0 0.0
    %317 = vmatprep.subr.mxu0 0.0
    %318 = vmatpush2.msra.mxu0 0.0
    %319 = vmatprep.subr.mxu0 0.0
    %320 = vmatpush2.msra.mxu0 0.0
    %321 = vmatprep.mubr.f32.mxu0 0.0
    %322 = vmatmul.mubr.f32.gmra.mxu0 %v255
    %v323 = vpop.f32.mrf.mxu0
    %v324 = vadd.f32 0.0, %v323
    %v325 = vpop.f32.mrf.mxu0
    %326 = vdwg.mxu0
    %vm327 = vcmp.ge.s32.totalorder %v253, 0
    %vm328 = vcmp.lt.s32.totalorder %v253, 16
    %vm329 = vmand %vm327, %vm328
    %v330 = vsel %vm329, %v324, 0.0
    %v331 = vadd.f32 %v330, 0.0
    %v333 = vsel %vm207, %v249, 0
    %335 = vmatprep.subr.mxu0 0.0
    %336 = vmatpush1.msra.mxu0 0.0
    %337 = vmatprep.subr.mxu0 0.0
    %338 = vmatpush1.msra.mxu0 0.0
    %339 = vmatprep.subr.mxu0 0.0
    %340 = vmatpush1.msra.mxu0 0.0
    %341 = vmatprep.subr.mxu0 0.0
    %342 = vmatpush1.msra.mxu0 0.0
    %343 = vmatprep.subr.mxu0 0.0
    %344 = vmatpush1.msra.mxu0 0.0
    %345 = vmatprep.subr.mxu0 0.0
    %346 = vmatpush1.msra.mxu0 0.0
    %347 = vmatprep.subr.mxu0 0.0
    %348 = vmatpush1.msra.mxu0 0.0
    %349 = vmatprep.subr.mxu0 0.0
    %350 = vmatpush1.msra.mxu0 0.0
    %351 = vmatprep.subr.mxu0 0.0
    %352 = vmatpush1.msra.mxu0 0.0
    %353 = vmatprep.subr.mxu0 0.0
    %354 = vmatpush1.msra.mxu0 0.0
    %355 = vmatprep.subr.mxu0 0.0
    %356 = vmatpush1.msra.mxu0 0.0
    %357 = vmatprep.subr.mxu0 0.0
    %358 = vmatpush1.msra.mxu0 0.0
    %359 = vmatprep.subr.mxu0 0.0
    %360 = vmatpush1.msra.mxu0 0.0
    %361 = vmatprep.subr.mxu0 0.0
    %362 = vmatpush1.msra.mxu0 0.0
    %363 = vmatprep.subr.mxu0 0.0
    %364 = vmatpush1.msra.mxu0 0.0
    %365 = vmatprep.subr.mxu0 0.0
    %366 = vmatpush1.msra.mxu0 %v120
    %367 = vmatprep.subr.mxu0 0.0
    %368 = vmatpush2.msra.mxu0 0.0
    %369 = vmatprep.subr.mxu0 0.0
    %370 = vmatpush2.msra.mxu0 0.0
    %371 = vmatprep.subr.mxu0 0.0
    %372 = vmatpush2.msra.mxu0 0.0
    %373 = vmatprep.subr.mxu0 0.0
    %374 = vmatpush2.msra.mxu0 0.0
    %375 = vmatprep.subr.mxu0 0.0
    %376 = vmatpush2.msra.mxu0 0.0
    %377 = vmatprep.subr.mxu0 0.0
    %378 = vmatpush2.msra.mxu0 0.0
    %379 = vmatprep.subr.mxu0 0.0
    %380 = vmatpush2.msra.mxu0 0.0
    %381 = vmatprep.subr.mxu0 0.0
    %382 = vmatpush2.msra.mxu0 0.0
    %383 = vmatprep.subr.mxu0 0.0
    %384 = vmatpush2.msra.mxu0 0.0
    %385 = vmatprep.subr.mxu0 0.0
    %386 = vmatpush2.msra.mxu0 0.0
    %387 = vmatprep.subr.mxu0 0.0
    %388 = vmatpush2.msra.mxu0 0.0
    %389 = vmatprep.subr.mxu0 0.0
    %390 = vmatpush2.msra.mxu0 0.0
    %391 = vmatprep.subr.mxu0 0.0
    %392 = vmatpush2.msra.mxu0 0.0
    %393 = vmatprep.subr.mxu0 0.0
    %394 = vmatpush2.msra.mxu0 0.0
    %395 = vmatprep.subr.mxu0 0.0
    %396 = vmatpush2.msra.mxu0 0.0
    %397 = vmatprep.subr.mxu0 0.0
    %398 = vmatpush2.msra.mxu0 0.0
    %399 = vmatprep.mubr.f32.mxu0 0.0
    %400 = vmatmul.mubr.f32.gmra.mxu0 %v333
    %v401 = vpop.f32.mrf.mxu0
    %v402 = vadd.f32 0.0, %v401
    %v403 = vpop.f32.mrf.mxu0
    %404 = vdwg.mxu0
    %vm405 = vcmp.ge.s32.totalorder %v253, 16
    %vm406 = vcmp.lt.s32.totalorder %v253, 32
    %vm407 = vmand %vm405, %vm406
    %v408 = vsel %vm407, %v402, 0.0
    %v409 = vadd.f32 %v331, %v408
    %v411 = vsel %vm207, %v250, 0
    %413 = vmatprep.subr.mxu0 0.0
    %414 = vmatpush1.msra.mxu0 0.0
    %415 = vmatprep.subr.mxu0 0.0
    %416 = vmatpush1.msra.mxu0 0.0
    %417 = vmatprep.subr.mxu0 0.0
    %418 = vmatpush1.msra.mxu0 0.0
    %419 = vmatprep.subr.mxu0 0.0
    %420 = vmatpush1.msra.mxu0 0.0
    %421 = vmatprep.subr.mxu0 0.0
    %422 = vmatpush1.msra.mxu0 0.0
    %423 = vmatprep.subr.mxu0 0.0
    %424 = vmatpush1.msra.mxu0 0.0
    %425 = vmatprep.subr.mxu0 0.0
    %426 = vmatpush1.msra.mxu0 0.0
    %427 = vmatprep.subr.mxu0 0.0
    %428 = vmatpush1.msra.mxu0 0.0
    %429 = vmatprep.subr.mxu0 0.0
    %430 = vmatpush1.msra.mxu0 0.0
    %431 = vmatprep.subr.mxu0 0.0
    %432 = vmatpush1.msra.mxu0 0.0
    %433 = vmatprep.subr.mxu0 0.0
    %434 = vmatpush1.msra.mxu0 0.0
    %435 = vmatprep.subr.mxu0 0.0
    %436 = vmatpush1.msra.mxu0 0.0
    %437 = vmatprep.subr.mxu0 0.0
    %438 = vmatpush1.msra.mxu0 0.0
    %439 = vmatprep.subr.mxu0 0.0
    %440 = vmatpush1.msra.mxu0 0.0
    %441 = vmatprep.subr.mxu0 0.0
    %442 = vmatpush1.msra.mxu0 0.0
    %443 = vmatprep.subr.mxu0 0.0
    %444 = vmatpush1.msra.mxu0 %v120
    %445 = vmatprep.subr.mxu0 0.0
    %446 = vmatpush2.msra.mxu0 0.0
    %447 = vmatprep.subr.mxu0 0.0
    %448 = vmatpush2.msra.mxu0 0.0
    %449 = vmatprep.subr.mxu0 0.0
    %450 = vmatpush2.msra.mxu0 0.0
    %451 = vmatprep.subr.mxu0 0.0
    %452 = vmatpush2.msra.mxu0 0.0
    %453 = vmatprep.subr.mxu0 0.0
    %454 = vmatpush2.msra.mxu0 0.0
    %455 = vmatprep.subr.mxu0 0.0
    %456 = vmatpush2.msra.mxu0 0.0
    %457 = vmatprep.subr.mxu0 0.0
    %458 = vmatpush2.msra.mxu0 0.0
    %459 = vmatprep.subr.mxu0 0.0
    %460 = vmatpush2.msra.mxu0 0.0
    %461 = vmatprep.subr.mxu0 0.0
    %462 = vmatpush2.msra.mxu0 0.0
    %463 = vmatprep.subr.mxu0 0.0
    %464 = vmatpush2.msra.mxu0 0.0
    %465 = vmatprep.subr.mxu0 0.0
    %466 = vmatpush2.msra.mxu0 0.0
    %467 = vmatprep.subr.mxu0 0.0
    %468 = vmatpush2.msra.mxu0 0.0
    %469 = vmatprep.subr.mxu0 0.0
    %470 = vmatpush2.msra.mxu0 0.0
    %471 = vmatprep.subr.mxu0 0.0
    %472 = vmatpush2.msra.mxu0 0.0
    %473 = vmatprep.subr.mxu0 0.0
    %474 = vmatpush2.msra.mxu0 0.0
    %475 = vmatprep.subr.mxu0 0.0
    %476 = vmatpush2.msra.mxu0 0.0
    %477 = vmatprep.mubr.f32.mxu0 0.0
    %478 = vmatmul.mubr.f32.gmra.mxu0 %v411
    %v479 = vpop.f32.mrf.mxu0
    %v480 = vadd.f32 0.0, %v479
    %v481 = vpop.f32.mrf.mxu0
    %482 = vdwg.mxu0
    %vm483 = vcmp.ge.s32.totalorder %v253, 32
    %vm484 = vcmp.lt.s32.totalorder %v253, 48
    %vm485 = vmand %vm483, %vm484
    %v486 = vsel %vm485, %v480, 0.0
    %v487 = vadd.f32 %v409, %v486
    %v489 = vsel %vm207, %v251, 0
    %491 = vmatprep.subr.mxu0 0.0
    %492 = vmatpush1.msra.mxu0 0.0
    %493 = vmatprep.subr.mxu0 0.0
    %494 = vmatpush1.msra.mxu0 0.0
    %495 = vmatprep.subr.mxu0 0.0
    %496 = vmatpush1.msra.mxu0 0.0
    %497 = vmatprep.subr.mxu0 0.0
    %498 = vmatpush1.msra.mxu0 0.0
    %499 = vmatprep.subr.mxu0 0.0
    %500 = vmatpush1.msra.mxu0 0.0
    %501 = vmatprep.subr.mxu0 0.0
    %502 = vmatpush1.msra.mxu0 0.0
    %503 = vmatprep.subr.mxu0 0.0
    %504 = vmatpush1.msra.mxu0 0.0
    %505 = vmatprep.subr.mxu0 0.0
    %506 = vmatpush1.msra.mxu0 0.0
    %507 = vmatprep.subr.mxu0 0.0
    %508 = vmatpush1.msra.mxu0 0.0
    %509 = vmatprep.subr.mxu0 0.0
    %510 = vmatpush1.msra.mxu0 0.0
    %511 = vmatprep.subr.mxu0 0.0
    %512 = vmatpush1.msra.mxu0 0.0
    %513 = vmatprep.subr.mxu0 0.0
    %514 = vmatpush1.msra.mxu0 0.0
    %515 = vmatprep.subr.mxu0 0.0
    %516 = vmatpush1.msra.mxu0 0.0
    %517 = vmatprep.subr.mxu0 0.0
    %518 = vmatpush1.msra.mxu0 0.0
    %519 = vmatprep.subr.mxu0 0.0
    %520 = vmatpush1.msra.mxu0 0.0
    %521 = vmatprep.subr.mxu0 0.0
    %522 = vmatpush1.msra.mxu0 %v120
    %523 = vmatprep.subr.mxu0 0.0
    %524 = vmatpush2.msra.mxu0 0.0
    %525 = vmatprep.subr.mxu0 0.0
    %526 = vmatpush2.msra.mxu0 0.0
    %527 = vmatprep.subr.mxu0 0.0
    %528 = vmatpush2.msra.mxu0 0.0
    %529 = vmatprep.subr.mxu0 0.0
    %530 = vmatpush2.msra.mxu0 0.0
    %531 = vmatprep.subr.mxu0 0.0
    %532 = vmatpush2.msra.mxu0 0.0
    %533 = vmatprep.subr.mxu0 0.0
    %534 = vmatpush2.msra.mxu0 0.0
    %535 = vmatprep.subr.mxu0 0.0
    %536 = vmatpush2.msra.mxu0 0.0
    %537 = vmatprep.subr.mxu0 0.0
    %538 = vmatpush2.msra.mxu0 0.0
    %539 = vmatprep.subr.mxu0 0.0
    %540 = vmatpush2.msra.mxu0 0.0
    %541 = vmatprep.subr.mxu0 0.0
    %542 = vmatpush2.msra.mxu0 0.0
    %543 = vmatprep.subr.mxu0 0.0
    %544 = vmatpush2.msra.mxu0 0.0
    %545 = vmatprep.subr.mxu0 0.0
    %546 = vmatpush2.msra.mxu0 0.0
    %547 = vmatprep.subr.mxu0 0.0
    %548 = vmatpush2.msra.mxu0 0.0
    %549 = vmatprep.subr.mxu0 0.0
    %550 = vmatpush2.msra.mxu0 0.0
    %551 = vmatprep.subr.mxu0 0.0
    %552 = vmatpush2.msra.mxu0 0.0
    %553 = vmatprep.subr.mxu0 0.0
    %554 = vmatpush2.msra.mxu0 0.0
    %555 = vmatprep.mubr.f32.mxu0 0.0
    %556 = vmatmul.mubr.f32.gmra.mxu0 %v489
    %v557 = vpop.f32.mrf.mxu0
    %v558 = vadd.f32 0.0, %v557
    %v559 = vpop.f32.mrf.mxu0
    %560 = vdwg.mxu0
    %vm561 = vcmp.ge.s32.totalorder %v253, 48
    %vm562 = vcmp.lt.s32.totalorder %v253, 64
    %vm563 = vmand %vm561, %vm562
    %v564 = vsel %vm563, %v558, 0.0
    %v565 = vadd.f32 %v487, %v564
    %v567 = vlaneseq
    %v568 = vshrl.u32 %v567, 7
    %v569 = vsub.s32 0, %v568
    %v570 = vrot.slane %v26, %v569
    %v572 = vadd.f32 %v565, %v570
    %vm573 = vcmp.gt.f32.partialorder %v572, 0.0
    %v574 = vmin.f32 %v572, 0.0
    %v575 = vmul.f32 %v574, 1.442695
    %v576 = vpow.pop %v575
    %v577 = vsub.f32 %v576, 1.0
    %v578 = vsel %vm573, %v572, %v577
    %v579 = vld [vmem:[%s3] sm:$0xff]
    %v580 = vld [vmem:[%s3 + $0x8] sm:$0xff]
    %v581 = vld [vmem:[%s3 + $0x10] sm:$0xff]
    %v582 = vld [vmem:[%s3 + $0x18] sm:$0xff]
    %v583 = vld [vmem:[%s3 + $0x20] sm:$0xff]
    %v584 = vld [vmem:[%s3 + $0x28] sm:$0xff]
    %v585 = vld [vmem:[%s3 + $0x30] sm:$0xff]
    %v586 = vld [vmem:[%s3 + $0x38] sm:$0xff]
    %v587 = vld [vmem:[%s4] sm:$0x1]
    %vm588 = vcmask 523264
    %v589 = vsel %vm588, %v578, 0.0
    %v590 = vrot.slane %v589, 4
    %v591 = vadd.f32 %v589, %v590
    %v592 = vrot.slane %v591, 2
    %v593 = vadd.f32 %v591, %v592
    %v594 = vrot.slane %v593, 1
    %v595 = vadd.f32 %v593, %v594
    %v596 = vmul.f32 %v595, %v35
    %v597 = vsub.f32 %v578, %v596
    %v598 = vmul.f32 %v597, %v597
    %v599 = vsel %vm588, %v598, 0.0
    %v600 = vrot.slane %v599, 4
    %v601 = vadd.f32 %v599, %v600
    %v602 = vrot.slane %v601, 2
    %v603 = vadd.f32 %v601, %v602
    %v604 = vrot.slane %v603, 1
    %v605 = vadd.f32 %v603, %v604
    %v606 = vmul.f32 %v605, %v35
    %v607 = vadd.f32 %v606, 1e-05
    %v608 = vrsqrt.pop %v607
    %v609 = vmul.f32 %v597, %v608
    %v611 = vsel %vm588, %v609, 0
    %613 = vmatprep.subr.mxu0 0.0
    %614 = vmatpush1.msra.mxu0 0.0
    %615 = vmatprep.subr.mxu0 0.0
    %616 = vmatpush1.msra.mxu0 0.0
    %617 = vmatprep.subr.mxu0 0.0
    %618 = vmatpush1.msra.mxu0 0.0
    %619 = vmatprep.subr.mxu0 0.0
    %620 = vmatpush1.msra.mxu0 0.0
    %621 = vmatprep.subr.mxu0 0.0
    %622 = vmatpush1.msra.mxu0 0.0
    %623 = vmatprep.subr.mxu0 0.0
    %624 = vmatpush1.msra.mxu0 0.0
    %625 = vmatprep.subr.mxu0 0.0
    %626 = vmatpush1.msra.mxu0 0.0
    %627 = vmatprep.subr.mxu0 0.0
    %628 = vmatpush1.msra.mxu0 0.0
    %629 = vmatprep.subr.mxu0 0.0
    %630 = vmatpush1.msra.mxu0 %v586
    %631 = vmatprep.subr.mxu0 0.0
    %632 = vmatpush1.msra.mxu0 %v585
    %633 = vmatprep.subr.mxu0 0.0
    %634 = vmatpush1.msra.mxu0 %v584
    %635 = vmatprep.subr.mxu0 0.0
    %636 = vmatpush1.msra.mxu0 %v583
    %637 = vmatprep.subr.mxu0 0.0
    %638 = vmatpush1.msra.mxu0 %v582
    %639 = vmatprep.subr.mxu0 0.0
    %640 = vmatpush1.msra.mxu0 %v581
    %641 = vmatprep.subr.mxu0 0.0
    %642 = vmatpush1.msra.mxu0 %v580
    %643 = vmatprep.subr.mxu0 0.0
    %644 = vmatpush1.msra.mxu0 %v579
    %645 = vmatprep.subr.mxu0 0.0
    %646 = vmatpush2.msra.mxu0 0.0
    %647 = vmatprep.subr.mxu0 0.0
    %648 = vmatpush2.msra.mxu0 0.0
    %649 = vmatprep.subr.mxu0 0.0
    %650 = vmatpush2.msra.mxu0 0.0
    %651 = vmatprep.subr.mxu0 0.0
    %652 = vmatpush2.msra.mxu0 0.0
    %653 = vmatprep.subr.mxu0 0.0
    %654 = vmatpush2.msra.mxu0 0.0
    %655 = vmatprep.subr.mxu0 0.0
    %656 = vmatpush2.msra.mxu0 0.0
    %657 = vmatprep.subr.mxu0 0.0
    %658 = vmatpush2.msra.mxu0 0.0
    %659 = vmatprep.subr.mxu0 0.0
    %660 = vmatpush2.msra.mxu0 0.0
    %661 = vmatprep.subr.mxu0 0.0
    %662 = vmatpush2.msra.mxu0 0.0
    %663 = vmatprep.subr.mxu0 0.0
    %664 = vmatpush2.msra.mxu0 0.0
    %665 = vmatprep.subr.mxu0 0.0
    %666 = vmatpush2.msra.mxu0 0.0
    %667 = vmatprep.subr.mxu0 0.0
    %668 = vmatpush2.msra.mxu0 0.0
    %669 = vmatprep.subr.mxu0 0.0
    %670 = vmatpush2.msra.mxu0 0.0
    %671 = vmatprep.subr.mxu0 0.0
    %672 = vmatpush2.msra.mxu0 0.0
    %673 = vmatprep.subr.mxu0 0.0
    %674 = vmatpush2.msra.mxu0 0.0
    %675 = vmatprep.subr.mxu0 0.0
    %676 = vmatpush2.msra.mxu0 0.0
    %677 = vmatprep.mubr.f32.mxu0 0.0
    %678 = vmatmul.mubr.f32.gmra.mxu0 %v611
    %v679 = vpop.f32.mrf.mxu0
    %v680 = vadd.f32 0.0, %v679
    %v681 = vpop.f32.mrf.mxu0
    %682 = vdwg.mxu0
    %684 = vrot.lane.b32.xlu0 %v680, 95
    %v685 = vpop.permute.xlu0 %684
    %687 = vxpose.xlu0.b32.start [1/16] %v685, 128
    %688 = vxpose.xlu0.b32.cont [2/16] 0.0, 128
    %689 = vxpose.xlu0.b32.cont [3/16] 0.0, 128
    %690 = vxpose.xlu0.b32.cont [4/16] 0.0, 128
    %691 = vxpose.xlu0.b32.cont [5/16] 0.0, 128
    %692 = vxpose.xlu0.b32.cont [6/16] 0.0, 128
    %693 = vxpose.xlu0.b32.cont [7/16] 0.0, 128
    %694 = vxpose.xlu0.b32.cont [8/16] 0.0, 128
    %695 = vxpose.xlu0.b32.cont [9/16] 0.0, 128
    %696 = vxpose.xlu0.b32.cont [10/16] 0.0, 128
    %697 = vxpose.xlu0.b32.cont [11/16] 0.0, 128
    %698 = vxpose.xlu0.b32.cont [12/16] 0.0, 128
    %699 = vxpose.xlu0.b32.cont [13/16] 0.0, 128
    %700 = vxpose.xlu0.b32.cont [14/16] 0.0, 128
    %701 = vxpose.xlu0.b32.cont [15/16] 0.0, 128
    %702 = vxpose.xlu0.b32.end [16/16] 0.0, 128
    %v703 = vpop.trf.xlu0
    %v704 = vpop.trf.xlu0
    %v705 = vpop.trf.xlu0
    %v706 = vpop.trf.xlu0
    %v707 = vpop.trf.xlu0
    %v708 = vpop.trf.xlu0
    %v709 = vpop.trf.xlu0
    %v710 = vpop.trf.xlu0
    %v711 = vpop.trf.xlu0
    %v712 = vpop.trf.xlu0
    %v713 = vpop.trf.xlu0
    %v714 = vpop.trf.xlu0
    %v715 = vpop.trf.xlu0
    %v716 = vpop.trf.xlu0
    %v717 = vpop.trf.xlu0
    %v718 = vpop.trf.xlu0
    %719 = vset.pattern.permute.xlu0 32
    %720 = vperm.xlu0 %719, %v680
    %v721 = vpop.permute.xlu0 %720
    %v723 = vlaneseq
    %v724 = vshrl.u32 %v723, 7
    %v725 = vsub.s32 0, %v724
    %v726 = vrot.slane %v703, %v725
    %v727 = vadd.f32 %v721, %v726
    %vm728 = vcmp.ge.f32.partialorder %v727, 0.0
    %v729 = vmul.f32 %v727, 0.2
    %v730 = vsel %vm728, %v727, %v729
    %v731 = vsel %vm207, %v730, -inf
    %732 = vmax.xlane.f32.xlu0 %v731
    %v733 = vpop.xlane.xlu0 %732
    %v734 = vsub.f32 %v730, %v733
    %v735 = vmul.f32 %v734, 1.442695
    %v736 = vpow.pop %v735
    %v737 = vsel %vm207, %v736, 0.0
    %738 = vadd.xlane.f32.xlu0 %v737
    %v739 = vpop.xlane.xlu0 %738
    %v740 = vrcp.pop %v739
    %v741 = vmul.f32 %v736, %v740
    %v743 = vlaneseq
    %v744 = vshrl.u32 %v743, 7
    %v745 = vsub.s32 0, %v744
    %v746 = vrot.slane %v587, %v745
    %v749 = vsel %vm207, %v741, 0
    %751 = vmatprep.subr.mxu0 0.0
    %752 = vmatpush1.msra.mxu0 0.0
    %753 = vmatprep.subr.mxu0 0.0
    %754 = vmatpush1.msra.mxu0 0.0
    %755 = vmatprep.subr.mxu0 0.0
    %756 = vmatpush1.msra.mxu0 0.0
    %757 = vmatprep.subr.mxu0 0.0
    %758 = vmatpush1.msra.mxu0 0.0
    %759 = vmatprep.subr.mxu0 0.0
    %760 = vmatpush1.msra.mxu0 0.0
    %761 = vmatprep.subr.mxu0 0.0
    %762 = vmatpush1.msra.mxu0 0.0
    %763 = vmatprep.subr.mxu0 0.0
    %764 = vmatpush1.msra.mxu0 0.0
    %765 = vmatprep.subr.mxu0 0.0
    %766 = vmatpush1.msra.mxu0 0.0
    %767 = vmatprep.subr.mxu0 0.0
    %768 = vmatpush1.msra.mxu0 0.0
    %769 = vmatprep.subr.mxu0 0.0
    %770 = vmatpush1.msra.mxu0 0.0
    %771 = vmatprep.subr.mxu0 0.0
    %772 = vmatpush1.msra.mxu0 0.0
    %773 = vmatprep.subr.mxu0 0.0
    %774 = vmatpush1.msra.mxu0 0.0
    %775 = vmatprep.subr.mxu0 0.0
    %776 = vmatpush1.msra.mxu0 0.0
    %777 = vmatprep.subr.mxu0 0.0
    %778 = vmatpush1.msra.mxu0 0.0
    %779 = vmatprep.subr.mxu0 0.0
    %780 = vmatpush1.msra.mxu0 0.0
    %781 = vmatprep.subr.mxu0 0.0
    %782 = vmatpush1.msra.mxu0 %v680
    %783 = vmatprep.subr.mxu0 0.0
    %784 = vmatpush2.msra.mxu0 0.0
    %785 = vmatprep.subr.mxu0 0.0
    %786 = vmatpush2.msra.mxu0 0.0
    %787 = vmatprep.subr.mxu0 0.0
    %788 = vmatpush2.msra.mxu0 0.0
    %789 = vmatprep.subr.mxu0 0.0
    %790 = vmatpush2.msra.mxu0 0.0
    %791 = vmatprep.subr.mxu0 0.0
    %792 = vmatpush2.msra.mxu0 0.0
    %793 = vmatprep.subr.mxu0 0.0
    %794 = vmatpush2.msra.mxu0 0.0
    %795 = vmatprep.subr.mxu0 0.0
    %796 = vmatpush2.msra.mxu0 0.0
    %797 = vmatprep.subr.mxu0 0.0
    %798 = vmatpush2.msra.mxu0 0.0
    %799 = vmatprep.subr.mxu0 0.0
    %800 = vmatpush2.msra.mxu0 0.0
    %801 = vmatprep.subr.mxu0 0.0
    %802 = vmatpush2.msra.mxu0 0.0
    %803 = vmatprep.subr.mxu0 0.0
    %804 = vmatpush2.msra.mxu0 0.0
    %805 = vmatprep.subr.mxu0 0.0
    %806 = vmatpush2.msra.mxu0 0.0
    %807 = vmatprep.subr.mxu0 0.0
    %808 = vmatpush2.msra.mxu0 0.0
    %809 = vmatprep.subr.mxu0 0.0
    %810 = vmatpush2.msra.mxu0 0.0
    %811 = vmatprep.subr.mxu0 0.0
    %812 = vmatpush2.msra.mxu0 0.0
    %813 = vmatprep.subr.mxu0 0.0
    %814 = vmatpush2.msra.mxu0 0.0
    %815 = vmatprep.mubr.f32.mxu0 0.0
    %816 = vmatmul.mubr.f32.gmra.mxu0 %v749
    %v817 = vpop.f32.mrf.mxu0
    %v818 = vadd.f32 %v746, %v817
    %v819 = vpop.f32.mrf.mxu0
    %820 = vdwg.mxu0
    %821 = vst.msk [vmem:[#allocation2] sm:$0xff] %vm27, %v818
    %s822 = scalar_lea.vmem %s0, 8
    %v823 = vld [vmem:[%s822] sm:$0xff]
    %v824 = vld [vmem:[%s1] sm:$0xff]
    %v825 = vld [vmem:[%s1 + $0x8] sm:$0xff]
    %v826 = vld [vmem:[%s1 + $0x10] sm:$0xff]
    %v827 = vld [vmem:[%s1 + $0x18] sm:$0xff]
    %v828 = vld [vmem:[%s2] sm:$0x1]
    %v829 = vsel %vm27, %v823, 0.0
    %v830 = vrot.slane %v829, 4
    %v831 = vadd.f32 %v829, %v830
    %v832 = vrot.slane %v831, 2
    %v833 = vadd.f32 %v831, %v832
    %v834 = vrot.slane %v833, 1
    %v835 = vadd.f32 %v833, %v834
    %v836 = vmul.f32 %v835, %v35
    %v837 = vsub.f32 %v823, %v836
    %v838 = vmul.f32 %v837, %v837
    %v839 = vsel %vm27, %v838, 0.0
    %v840 = vrot.slane %v839, 4
    %v841 = vadd.f32 %v839, %v840
    %v842 = vrot.slane %v841, 2
    %v843 = vadd.f32 %v841, %v842
    %v844 = vrot.slane %v843, 1
    %v845 = vadd.f32 %v843, %v844
    %v846 = vmul.f32 %v845, %v35
    %v847 = vadd.f32 %v846, 1e-05
    %v848 = vrsqrt.pop %v847
    %v849 = vmul.f32 %v837, %v848
    %v851 = vsel %vm27, %v849, 0
    %853 = vmatprep.subr.mxu0 0.0
    %854 = vmatpush1.msra.mxu0 0.0
    %855 = vmatprep.subr.mxu0 0.0
    %856 = vmatpush1.msra.mxu0 0.0
    %857 = vmatprep.subr.mxu0 0.0
    %858 = vmatpush1.msra.mxu0 0.0
    %859 = vmatprep.subr.mxu0 0.0
    %860 = vmatpush1.msra.mxu0 0.0
    %861 = vmatprep.subr.mxu0 0.0
    %862 = vmatpush1.msra.mxu0 0.0
    %863 = vmatprep.subr.mxu0 0.0
    %864 = vmatpush1.msra.mxu0 0.0
    %865 = vmatprep.subr.mxu0 0.0
    %866 = vmatpush1.msra.mxu0 0.0
    %867 = vmatprep.subr.mxu0 0.0
    %868 = vmatpush1.msra.mxu0 0.0
    %869 = vmatprep.subr.mxu0 0.0
    %870 = vmatpush1.msra.mxu0 0.0
    %871 = vmatprep.subr.mxu0 0.0
    %872 = vmatpush1.msra.mxu0 0.0
    %873 = vmatprep.subr.mxu0 0.0
    %874 = vmatpush1.msra.mxu0 0.0
    %875 = vmatprep.subr.mxu0 0.0
    %876 = vmatpush1.msra.mxu0 0.0
    %877 = vmatprep.subr.mxu0 0.0
    %878 = vmatpush1.msra.mxu0 %v827
    %879 = vmatprep.subr.mxu0 0.0
    %880 = vmatpush1.msra.mxu0 %v826
    %881 = vmatprep.subr.mxu0 0.0
    %882 = vmatpush1.msra.mxu0 %v825
    %883 = vmatprep.subr.mxu0 0.0
    %884 = vmatpush1.msra.mxu0 %v824
    %885 = vmatprep.subr.mxu0 0.0
    %886 = vmatpush2.msra.mxu0 0.0
    %887 = vmatprep.subr.mxu0 0.0
    %888 = vmatpush2.msra.mxu0 0.0
    %889 = vmatprep.subr.mxu0 0.0
    %890 = vmatpush2.msra.mxu0 0.0
    %891 = vmatprep.subr.mxu0 0.0
    %892 = vmatpush2.msra.mxu0 0.0
    %893 = vmatprep.subr.mxu0 0.0
    %894 = vmatpush2.msra.mxu0 0.0
    %895 = vmatprep.subr.mxu0 0.0
    %896 = vmatpush2.msra.mxu0 0.0
    %897 = vmatprep.subr.mxu0 0.0
    %898 = vmatpush2.msra.mxu0 0.0
    %899 = vmatprep.subr.mxu0 0.0
    %900 = vmatpush2.msra.mxu0 0.0
    %901 = vmatprep.subr.mxu0 0.0
    %902 = vmatpush2.msra.mxu0 0.0
    %903 = vmatprep.subr.mxu0 0.0
    %904 = vmatpush2.msra.mxu0 0.0
    %905 = vmatprep.subr.mxu0 0.0
    %906 = vmatpush2.msra.mxu0 0.0
    %907 = vmatprep.subr.mxu0 0.0
    %908 = vmatpush2.msra.mxu0 0.0
    %909 = vmatprep.subr.mxu0 0.0
    %910 = vmatpush2.msra.mxu0 0.0
    %911 = vmatprep.subr.mxu0 0.0
    %912 = vmatpush2.msra.mxu0 0.0
    %913 = vmatprep.subr.mxu0 0.0
    %914 = vmatpush2.msra.mxu0 0.0
    %915 = vmatprep.subr.mxu0 0.0
    %916 = vmatpush2.msra.mxu0 0.0
    %917 = vmatprep.mubr.f32.mxu0 0.0
    %918 = vmatmul.mubr.f32.gmra.mxu0 %v851
    %v919 = vpop.f32.mrf.mxu0
    %v920 = vadd.f32 0.0, %v919
    %v921 = vpop.f32.mrf.mxu0
    %922 = vdwg.mxu0
    %924 = vrot.lane.b32.xlu0 %v920, 60
    %v925 = vpop.permute.xlu0 %924
    %927 = vxpose.xlu0.b32.start [1/16] %v925, 128
    %928 = vxpose.xlu0.b32.cont [2/16] 0.0, 128
    %929 = vxpose.xlu0.b32.cont [3/16] 0.0, 128
    %930 = vxpose.xlu0.b32.cont [4/16] 0.0, 128
    %931 = vxpose.xlu0.b32.cont [5/16] 0.0, 128
    %932 = vxpose.xlu0.b32.cont [6/16] 0.0, 128
    %933 = vxpose.xlu0.b32.cont [7/16] 0.0, 128
    %934 = vxpose.xlu0.b32.cont [8/16] 0.0, 128
    %935 = vxpose.xlu0.b32.cont [9/16] 0.0, 128
    %936 = vxpose.xlu0.b32.cont [10/16] 0.0, 128
    %937 = vxpose.xlu0.b32.cont [11/16] 0.0, 128
    %938 = vxpose.xlu0.b32.cont [12/16] 0.0, 128
    %939 = vxpose.xlu0.b32.cont [13/16] 0.0, 128
    %940 = vxpose.xlu0.b32.cont [14/16] 0.0, 128
    %941 = vxpose.xlu0.b32.cont [15/16] 0.0, 128
    %942 = vxpose.xlu0.b32.end [16/16] 0.0, 128
    %v943 = vpop.trf.xlu0
    %v944 = vpop.trf.xlu0
    %v945 = vpop.trf.xlu0
    %v946 = vpop.trf.xlu0
    %v947 = vpop.trf.xlu0
    %v948 = vpop.trf.xlu0
    %v949 = vpop.trf.xlu0
    %v950 = vpop.trf.xlu0
    %v951 = vpop.trf.xlu0
    %v952 = vpop.trf.xlu0
    %v953 = vpop.trf.xlu0
    %v954 = vpop.trf.xlu0
    %v955 = vpop.trf.xlu0
    %v956 = vpop.trf.xlu0
    %v957 = vpop.trf.xlu0
    %v958 = vpop.trf.xlu0
    %959 = vset.pattern.permute.xlu0 64
    %960 = vperm.xlu0 %959, %v920
    %v961 = vpop.permute.xlu0 %960
    %v963 = vlaneseq
    %v964 = vshrl.u32 %v963, 7
    %v965 = vsub.s32 0, %v964
    %v966 = vrot.slane %v943, %v965
    %v967 = vadd.f32 %v961, %v966
    %968 = vset.pattern.permute.xlu0 65
    %969 = vperm.xlu0 %968, %v920
    %v970 = vpop.permute.xlu0 %969
    %v972 = vlaneseq
    %v973 = vshrl.u32 %v972, 7
    %v974 = vsub.s32 1, %v973
    %v975 = vrot.slane %v943, %v974
    %v976 = vadd.f32 %v970, %v975
    %977 = vset.pattern.permute.xlu0 66
    %978 = vperm.xlu0 %977, %v920
    %v979 = vpop.permute.xlu0 %978
    %v981 = vlaneseq
    %v982 = vshrl.u32 %v981, 7
    %v983 = vsub.s32 2, %v982
    %v984 = vrot.slane %v943, %v983
    %v985 = vadd.f32 %v979, %v984
    %986 = vset.pattern.permute.xlu0 67
    %987 = vperm.xlu0 %986, %v920
    %v988 = vpop.permute.xlu0 %987
    %v990 = vlaneseq
    %v991 = vshrl.u32 %v990, 7
    %v992 = vsub.s32 3, %v991
    %v993 = vrot.slane %v943, %v992
    %v994 = vadd.f32 %v988, %v993
    %vm995 = vcmp.ge.f32.partialorder %v967, 0.0
    %vm996 = vcmp.ge.f32.partialorder %v976, 0.0
    %vm997 = vcmp.ge.f32.partialorder %v985, 0.0
    %vm998 = vcmp.ge.f32.partialorder %v994, 0.0
    %v999 = vmul.f32 %v967, 0.2
    %v1000 = vmul.f32 %v976, 0.2
    %v1001 = vmul.f32 %v985, 0.2
    %v1002 = vmul.f32 %v994, 0.2
    %v1003 = vsel %vm995, %v967, %v999
    %v1004 = vsel %vm996, %v976, %v1000
    %v1005 = vsel %vm997, %v985, %v1001
    %v1006 = vsel %vm998, %v994, %v1002
    %v1007 = vsel %vm207, %v1003, -inf
    %1008 = vmax.xlane.f32.xlu0 %v1007
    %v1009 = vpop.xlane.xlu0 %1008
    %v1010 = vsel %vm207, %v1004, -inf
    %1011 = vmax.xlane.f32.xlu0 %v1010
    %v1012 = vpop.xlane.xlu0 %1011
    %v1013 = vsel %vm207, %v1005, -inf
    %1014 = vmax.xlane.f32.xlu0 %v1013
    %v1015 = vpop.xlane.xlu0 %1014
    %v1016 = vsel %vm207, %v1006, -inf
    %1017 = vmax.xlane.f32.xlu0 %v1016
    %v1018 = vpop.xlane.xlu0 %1017
    %v1019 = vsub.f32 %v1003, %v1009
    %v1020 = vsub.f32 %v1004, %v1012
    %v1021 = vsub.f32 %v1005, %v1015
    %v1022 = vsub.f32 %v1006, %v1018
    %v1023 = vmul.f32 %v1019, 1.442695
    %v1024 = vpow.pop %v1023
    %v1025 = vmul.f32 %v1020, 1.442695
    %v1026 = vpow.pop %v1025
    %v1027 = vmul.f32 %v1021, 1.442695
    %v1028 = vpow.pop %v1027
    %v1029 = vmul.f32 %v1022, 1.442695
    %v1030 = vpow.pop %v1029
    %v1031 = vsel %vm207, %v1024, 0.0
    %1032 = vadd.xlane.f32.xlu0 %v1031
    %v1033 = vpop.xlane.xlu0 %1032
    %v1034 = vsel %vm207, %v1026, 0.0
    %1035 = vadd.xlane.f32.xlu0 %v1034
    %v1036 = vpop.xlane.xlu0 %1035
    %v1037 = vsel %vm207, %v1028, 0.0
    %1038 = vadd.xlane.f32.xlu0 %v1037
    %v1039 = vpop.xlane.xlu0 %1038
    %v1040 = vsel %vm207, %v1030, 0.0
    %1041 = vadd.xlane.f32.xlu0 %v1040
    %v1042 = vpop.xlane.xlu0 %1041
    %v1043 = vrcp.pop %v1033
    %v1044 = vrcp.pop %v1036
    %v1045 = vrcp.pop %v1039
    %v1046 = vrcp.pop %v1042
    %v1047 = vmul.f32 %v1024, %v1043
    %v1048 = vmul.f32 %v1026, %v1044
    %v1049 = vmul.f32 %v1028, %v1045
    %v1050 = vmul.f32 %v1030, %v1046
    %v1052 = vsel %vm207, %v1047, 0
    %1054 = vmatprep.subr.mxu0 0.0
    %1055 = vmatpush1.msra.mxu0 0.0
    %1056 = vmatprep.subr.mxu0 0.0
    %1057 = vmatpush1.msra.mxu0 0.0
    %1058 = vmatprep.subr.mxu0 0.0
    %1059 = vmatpush1.msra.mxu0 0.0
    %1060 = vmatprep.subr.mxu0 0.0
    %1061 = vmatpush1.msra.mxu0 0.0
    %1062 = vmatprep.subr.mxu0 0.0
    %1063 = vmatpush1.msra.mxu0 0.0
    %1064 = vmatprep.subr.mxu0 0.0
    %1065 = vmatpush1.msra.mxu0 0.0
    %1066 = vmatprep.subr.mxu0 0.0
    %1067 = vmatpush1.msra.mxu0 0.0
    %1068 = vmatprep.subr.mxu0 0.0
    %1069 = vmatpush1.msra.mxu0 0.0
    %1070 = vmatprep.subr.mxu0 0.0
    %1071 = vmatpush1.msra.mxu0 0.0
    %1072 = vmatprep.subr.mxu0 0.0
    %1073 = vmatpush1.msra.mxu0 0.0
    %1074 = vmatprep.subr.mxu0 0.0
    %1075 = vmatpush1.msra.mxu0 0.0
    %1076 = vmatprep.subr.mxu0 0.0
    %1077 = vmatpush1.msra.mxu0 0.0
    %1078 = vmatprep.subr.mxu0 0.0
    %1079 = vmatpush1.msra.mxu0 0.0
    %1080 = vmatprep.subr.mxu0 0.0
    %1081 = vmatpush1.msra.mxu0 0.0
    %1082 = vmatprep.subr.mxu0 0.0
    %1083 = vmatpush1.msra.mxu0 0.0
    %1084 = vmatprep.subr.mxu0 0.0
    %1085 = vmatpush1.msra.mxu0 %v920
    %1086 = vmatprep.subr.mxu0 0.0
    %1087 = vmatpush2.msra.mxu0 0.0
    %1088 = vmatprep.subr.mxu0 0.0
    %1089 = vmatpush2.msra.mxu0 0.0
    %1090 = vmatprep.subr.mxu0 0.0
    %1091 = vmatpush2.msra.mxu0 0.0
    %1092 = vmatprep.subr.mxu0 0.0
    %1093 = vmatpush2.msra.mxu0 0.0
    %1094 = vmatprep.subr.mxu0 0.0
    %1095 = vmatpush2.msra.mxu0 0.0
    %1096 = vmatprep.subr.mxu0 0.0
    %1097 = vmatpush2.msra.mxu0 0.0
    %1098 = vmatprep.subr.mxu0 0.0
    %1099 = vmatpush2.msra.mxu0 0.0
    %1100 = vmatprep.subr.mxu0 0.0
    %1101 = vmatpush2.msra.mxu0 0.0
    %1102 = vmatprep.subr.mxu0 0.0
    %1103 = vmatpush2.msra.mxu0 0.0
    %1104 = vmatprep.subr.mxu0 0.0
    %1105 = vmatpush2.msra.mxu0 0.0
    %1106 = vmatprep.subr.mxu0 0.0
    %1107 = vmatpush2.msra.mxu0 0.0
    %1108 = vmatprep.subr.mxu0 0.0
    %1109 = vmatpush2.msra.mxu0 0.0
    %1110 = vmatprep.subr.mxu0 0.0
    %1111 = vmatpush2.msra.mxu0 0.0
    %1112 = vmatprep.subr.mxu0 0.0
    %1113 = vmatpush2.msra.mxu0 0.0
    %1114 = vmatprep.subr.mxu0 0.0
    %1115 = vmatpush2.msra.mxu0 0.0
    %1116 = vmatprep.subr.mxu0 0.0
    %1117 = vmatpush2.msra.mxu0 0.0
    %1118 = vmatprep.mubr.f32.mxu0 0.0
    %1119 = vmatmul.mubr.f32.gmra.mxu0 %v1052
    %v1120 = vpop.f32.mrf.mxu0
    %v1121 = vadd.f32 0.0, %v1120
    %v1122 = vpop.f32.mrf.mxu0
    %1123 = vdwg.mxu0
    %v1124 = vsel %vm329, %v1121, 0.0
    %v1125 = vadd.f32 %v1124, 0.0
    %v1127 = vsel %vm207, %v1048, 0
    %1129 = vmatprep.subr.mxu0 0.0
    %1130 = vmatpush1.msra.mxu0 0.0
    %1131 = vmatprep.subr.mxu0 0.0
    %1132 = vmatpush1.msra.mxu0 0.0
    %1133 = vmatprep.subr.mxu0 0.0
    %1134 = vmatpush1.msra.mxu0 0.0
    %1135 = vmatprep.subr.mxu0 0.0
    %1136 = vmatpush1.msra.mxu0 0.0
    %1137 = vmatprep.subr.mxu0 0.0
    %1138 = vmatpush1.msra.mxu0 0.0
    %1139 = vmatprep.subr.mxu0 0.0
    %1140 = vmatpush1.msra.mxu0 0.0
    %1141 = vmatprep.subr.mxu0 0.0
    %1142 = vmatpush1.msra.mxu0 0.0
    %1143 = vmatprep.subr.mxu0 0.0
    %1144 = vmatpush1.msra.mxu0 0.0
    %1145 = vmatprep.subr.mxu0 0.0
    %1146 = vmatpush1.msra.mxu0 0.0
    %1147 = vmatprep.subr.mxu0 0.0
    %1148 = vmatpush1.msra.mxu0 0.0
    %1149 = vmatprep.subr.mxu0 0.0
    %1150 = vmatpush1.msra.mxu0 0.0
    %1151 = vmatprep.subr.mxu0 0.0
    %1152 = vmatpush1.msra.mxu0 0.0
    %1153 = vmatprep.subr.mxu0 0.0
    %1154 = vmatpush1.msra.mxu0 0.0
    %1155 = vmatprep.subr.mxu0 0.0
    %1156 = vmatpush1.msra.mxu0 0.0
    %1157 = vmatprep.subr.mxu0 0.0
    %1158 = vmatpush1.msra.mxu0 0.0
    %1159 = vmatprep.subr.mxu0 0.0
    %1160 = vmatpush1.msra.mxu0 %v920
    %1161 = vmatprep.subr.mxu0 0.0
    %1162 = vmatpush2.msra.mxu0 0.0
    %1163 = vmatprep.subr.mxu0 0.0
    %1164 = vmatpush2.msra.mxu0 0.0
    %1165 = vmatprep.subr.mxu0 0.0
    %1166 = vmatpush2.msra.mxu0 0.0
    %1167 = vmatprep.subr.mxu0 0.0
    %1168 = vmatpush2.msra.mxu0 0.0
    %1169 = vmatprep.subr.mxu0 0.0
    %1170 = vmatpush2.msra.mxu0 0.0
    %1171 = vmatprep.subr.mxu0 0.0
    %1172 = vmatpush2.msra.mxu0 0.0
    %1173 = vmatprep.subr.mxu0 0.0
    %1174 = vmatpush2.msra.mxu0 0.0
    %1175 = vmatprep.subr.mxu0 0.0
    %1176 = vmatpush2.msra.mxu0 0.0
    %1177 = vmatprep.subr.mxu0 0.0
    %1178 = vmatpush2.msra.mxu0 0.0
    %1179 = vmatprep.subr.mxu0 0.0
    %1180 = vmatpush2.msra.mxu0 0.0
    %1181 = vmatprep.subr.mxu0 0.0
    %1182 = vmatpush2.msra.mxu0 0.0
    %1183 = vmatprep.subr.mxu0 0.0
    %1184 = vmatpush2.msra.mxu0 0.0
    %1185 = vmatprep.subr.mxu0 0.0
    %1186 = vmatpush2.msra.mxu0 0.0
    %1187 = vmatprep.subr.mxu0 0.0
    %1188 = vmatpush2.msra.mxu0 0.0
    %1189 = vmatprep.subr.mxu0 0.0
    %1190 = vmatpush2.msra.mxu0 0.0
    %1191 = vmatprep.subr.mxu0 0.0
    %1192 = vmatpush2.msra.mxu0 0.0
    %1193 = vmatprep.mubr.f32.mxu0 0.0
    %1194 = vmatmul.mubr.f32.gmra.mxu0 %v1127
    %v1195 = vpop.f32.mrf.mxu0
    %v1196 = vadd.f32 0.0, %v1195
    %v1197 = vpop.f32.mrf.mxu0
    %1198 = vdwg.mxu0
    %v1199 = vsel %vm407, %v1196, 0.0
    %v1200 = vadd.f32 %v1125, %v1199
    %v1202 = vsel %vm207, %v1049, 0
    %1204 = vmatprep.subr.mxu0 0.0
    %1205 = vmatpush1.msra.mxu0 0.0
    %1206 = vmatprep.subr.mxu0 0.0
    %1207 = vmatpush1.msra.mxu0 0.0
    %1208 = vmatprep.subr.mxu0 0.0
    %1209 = vmatpush1.msra.mxu0 0.0
    %1210 = vmatprep.subr.mxu0 0.0
    %1211 = vmatpush1.msra.mxu0 0.0
    %1212 = vmatprep.subr.mxu0 0.0
    %1213 = vmatpush1.msra.mxu0 0.0
    %1214 = vmatprep.subr.mxu0 0.0
    %1215 = vmatpush1.msra.mxu0 0.0
    %1216 = vmatprep.subr.mxu0 0.0
    %1217 = vmatpush1.msra.mxu0 0.0
    %1218 = vmatprep.subr.mxu0 0.0
    %1219 = vmatpush1.msra.mxu0 0.0
    %1220 = vmatprep.subr.mxu0 0.0
    %1221 = vmatpush1.msra.mxu0 0.0
    %1222 = vmatprep.subr.mxu0 0.0
    %1223 = vmatpush1.msra.mxu0 0.0
    %1224 = vmatprep.subr.mxu0 0.0
    %1225 = vmatpush1.msra.mxu0 0.0
    %1226 = vmatprep.subr.mxu0 0.0
    %1227 = vmatpush1.msra.mxu0 0.0
    %1228 = vmatprep.subr.mxu0 0.0
    %1229 = vmatpush1.msra.mxu0 0.0
    %1230 = vmatprep.subr.mxu0 0.0
    %1231 = vmatpush1.msra.mxu0 0.0
    %1232 = vmatprep.subr.mxu0 0.0
    %1233 = vmatpush1.msra.mxu0 0.0
    %1234 = vmatprep.subr.mxu0 0.0
    %1235 = vmatpush1.msra.mxu0 %v920
    %1236 = vmatprep.subr.mxu0 0.0
    %1237 = vmatpush2.msra.mxu0 0.0
    %1238 = vmatprep.subr.mxu0 0.0
    %1239 = vmatpush2.msra.mxu0 0.0
    %1240 = vmatprep.subr.mxu0 0.0
    %1241 = vmatpush2.msra.mxu0 0.0
    %1242 = vmatprep.subr.mxu0 0.0
    %1243 = vmatpush2.msra.mxu0 0.0
    %1244 = vmatprep.subr.mxu0 0.0
    %1245 = vmatpush2.msra.mxu0 0.0
    %1246 = vmatprep.subr.mxu0 0.0
    %1247 = vmatpush2.msra.mxu0 0.0
    %1248 = vmatprep.subr.mxu0 0.0
    %1249 = vmatpush2.msra.mxu0 0.0
    %1250 = vmatprep.subr.mxu0 0.0
    %1251 = vmatpush2.msra.mxu0 0.0
    %1252 = vmatprep.subr.mxu0 0.0
    %1253 = vmatpush2.msra.mxu0 0.0
    %1254 = vmatprep.subr.mxu0 0.0
    %1255 = vmatpush2.msra.mxu0 0.0
    %1256 = vmatprep.subr.mxu0 0.0
    %1257 = vmatpush2.msra.mxu0 0.0
    %1258 = vmatprep.subr.mxu0 0.0
    %1259 = vmatpush2.msra.mxu0 0.0
    %1260 = vmatprep.subr.mxu0 0.0
    %1261 = vmatpush2.msra.mxu0 0.0
    %1262 = vmatprep.subr.mxu0 0.0
    %1263 = vmatpush2.msra.mxu0 0.0
    %1264 = vmatprep.subr.mxu0 0.0
    %1265 = vmatpush2.msra.mxu0 0.0
    %1266 = vmatprep.subr.mxu0 0.0
    %1267 = vmatpush2.msra.mxu0 0.0
    %1268 = vmatprep.mubr.f32.mxu0 0.0
    %1269 = vmatmul.mubr.f32.gmra.mxu0 %v1202
    %v1270 = vpop.f32.mrf.mxu0
    %v1271 = vadd.f32 0.0, %v1270
    %v1272 = vpop.f32.mrf.mxu0
    %1273 = vdwg.mxu0
    %v1274 = vsel %vm485, %v1271, 0.0
    %v1275 = vadd.f32 %v1200, %v1274
    %v1277 = vsel %vm207, %v1050, 0
    %1279 = vmatprep.subr.mxu0 0.0
    %1280 = vmatpush1.msra.mxu0 0.0
    %1281 = vmatprep.subr.mxu0 0.0
    %1282 = vmatpush1.msra.mxu0 0.0
    %1283 = vmatprep.subr.mxu0 0.0
    %1284 = vmatpush1.msra.mxu0 0.0
    %1285 = vmatprep.subr.mxu0 0.0
    %1286 = vmatpush1.msra.mxu0 0.0
    %1287 = vmatprep.subr.mxu0 0.0
    %1288 = vmatpush1.msra.mxu0 0.0
    %1289 = vmatprep.subr.mxu0 0.0
    %1290 = vmatpush1.msra.mxu0 0.0
    %1291 = vmatprep.subr.mxu0 0.0
    %1292 = vmatpush1.msra.mxu0 0.0
    %1293 = vmatprep.subr.mxu0 0.0
    %1294 = vmatpush1.msra.mxu0 0.0
    %1295 = vmatprep.subr.mxu0 0.0
    %1296 = vmatpush1.msra.mxu0 0.0
    %1297 = vmatprep.subr.mxu0 0.0
    %1298 = vmatpush1.msra.mxu0 0.0
    %1299 = vmatprep.subr.mxu0 0.0
    %1300 = vmatpush1.msra.mxu0 0.0
    %1301 = vmatprep.subr.mxu0 0.0
    %1302 = vmatpush1.msra.mxu0 0.0
    %1303 = vmatprep.subr.mxu0 0.0
    %1304 = vmatpush1.msra.mxu0 0.0
    %1305 = vmatprep.subr.mxu0 0.0
    %1306 = vmatpush1.msra.mxu0 0.0
    %1307 = vmatprep.subr.mxu0 0.0
    %1308 = vmatpush1.msra.mxu0 0.0
    %1309 = vmatprep.subr.mxu0 0.0
    %1310 = vmatpush1.msra.mxu0 %v920
    %1311 = vmatprep.subr.mxu0 0.0
    %1312 = vmatpush2.msra.mxu0 0.0
    %1313 = vmatprep.subr.mxu0 0.0
    %1314 = vmatpush2.msra.mxu0 0.0
    %1315 = vmatprep.subr.mxu0 0.0
    %1316 = vmatpush2.msra.mxu0 0.0
    %1317 = vmatprep.subr.mxu0 0.0
    %1318 = vmatpush2.msra.mxu0 0.0
    %1319 = vmatprep.subr.mxu0 0.0
    %1320 = vmatpush2.msra.mxu0 0.0
    %1321 = vmatprep.subr.mxu0 0.0
    %1322 = vmatpush2.msra.mxu0 0.0
    %1323 = vmatprep.subr.mxu0 0.0
    %1324 = vmatpush2.msra.mxu0 0.0
    %1325 = vmatprep.subr.mxu0 0.0
    %1326 = vmatpush2.msra.mxu0 0.0
    %1327 = vmatprep.subr.mxu0 0.0
    %1328 = vmatpush2.msra.mxu0 0.0
    %1329 = vmatprep.subr.mxu0 0.0
    %1330 = vmatpush2.msra.mxu0 0.0
    %1331 = vmatprep.subr.mxu0 0.0
    %1332 = vmatpush2.msra.mxu0 0.0
    %1333 = vmatprep.subr.mxu0 0.0
    %1334 = vmatpush2.msra.mxu0 0.0
    %1335 = vmatprep.subr.mxu0 0.0
    %1336 = vmatpush2.msra.mxu0 0.0
    %1337 = vmatprep.subr.mxu0 0.0
    %1338 = vmatpush2.msra.mxu0 0.0
    %1339 = vmatprep.subr.mxu0 0.0
    %1340 = vmatpush2.msra.mxu0 0.0
    %1341 = vmatprep.subr.mxu0 0.0
    %1342 = vmatpush2.msra.mxu0 0.0
    %1343 = vmatprep.mubr.f32.mxu0 0.0
    %1344 = vmatmul.mubr.f32.gmra.mxu0 %v1277
    %v1345 = vpop.f32.mrf.mxu0
    %v1346 = vadd.f32 0.0, %v1345
    %v1347 = vpop.f32.mrf.mxu0
    %1348 = vdwg.mxu0
    %v1349 = vsel %vm563, %v1346, 0.0
    %v1350 = vadd.f32 %v1275, %v1349
    %v1352 = vlaneseq
    %v1353 = vshrl.u32 %v1352, 7
    %v1354 = vsub.s32 0, %v1353
    %v1355 = vrot.slane %v828, %v1354
    %v1357 = vadd.f32 %v1350, %v1355
    %vm1358 = vcmp.gt.f32.partialorder %v1357, 0.0
    %v1359 = vmin.f32 %v1357, 0.0
    %v1360 = vmul.f32 %v1359, 1.442695
    %v1361 = vpow.pop %v1360
    %v1362 = vsub.f32 %v1361, 1.0
    %v1363 = vsel %vm1358, %v1357, %v1362
    %v1364 = vld [vmem:[%s3] sm:$0xff]
    %v1365 = vld [vmem:[%s3 + $0x8] sm:$0xff]
    %v1366 = vld [vmem:[%s3 + $0x10] sm:$0xff]
    %v1367 = vld [vmem:[%s3 + $0x18] sm:$0xff]
    %v1368 = vld [vmem:[%s3 + $0x20] sm:$0xff]
    %v1369 = vld [vmem:[%s3 + $0x28] sm:$0xff]
    %v1370 = vld [vmem:[%s3 + $0x30] sm:$0xff]
    %v1371 = vld [vmem:[%s3 + $0x38] sm:$0xff]
    %v1372 = vld [vmem:[%s4] sm:$0x1]
    %v1373 = vsel %vm588, %v1363, 0.0
    %v1374 = vrot.slane %v1373, 4
    %v1375 = vadd.f32 %v1373, %v1374
    %v1376 = vrot.slane %v1375, 2
    %v1377 = vadd.f32 %v1375, %v1376
    %v1378 = vrot.slane %v1377, 1
    %v1379 = vadd.f32 %v1377, %v1378
    %v1380 = vmul.f32 %v1379, %v35
    %v1381 = vsub.f32 %v1363, %v1380
    %v1382 = vmul.f32 %v1381, %v1381
    %v1383 = vsel %vm588, %v1382, 0.0
    %v1384 = vrot.slane %v1383, 4
    %v1385 = vadd.f32 %v1383, %v1384
    %v1386 = vrot.slane %v1385, 2
    %v1387 = vadd.f32 %v1385, %v1386
    %v1388 = vrot.slane %v1387, 1
    %v1389 = vadd.f32 %v1387, %v1388
    %v1390 = vmul.f32 %v1389, %v35
    %v1391 = vadd.f32 %v1390, 1e-05
    %v1392 = vrsqrt.pop %v1391
    %v1393 = vmul.f32 %v1381, %v1392
    %v1395 = vsel %vm588, %v1393, 0
    %1397 = vmatprep.subr.mxu0 0.0
    %1398 = vmatpush1.msra.mxu0 0.0
    %1399 = vmatprep.subr.mxu0 0.0
    %1400 = vmatpush1.msra.mxu0 0.0
    %1401 = vmatprep.subr.mxu0 0.0
    %1402 = vmatpush1.msra.mxu0 0.0
    %1403 = vmatprep.subr.mxu0 0.0
    %1404 = vmatpush1.msra.mxu0 0.0
    %1405 = vmatprep.subr.mxu0 0.0
    %1406 = vmatpush1.msra.mxu0 0.0
    %1407 = vmatprep.subr.mxu0 0.0
    %1408 = vmatpush1.msra.mxu0 0.0
    %1409 = vmatprep.subr.mxu0 0.0
    %1410 = vmatpush1.msra.mxu0 0.0
    %1411 = vmatprep.subr.mxu0 0.0
    %1412 = vmatpush1.msra.mxu0 0.0
    %1413 = vmatprep.subr.mxu0 0.0
    %1414 = vmatpush1.msra.mxu0 %v1371
    %1415 = vmatprep.subr.mxu0 0.0
    %1416 = vmatpush1.msra.mxu0 %v1370
    %1417 = vmatprep.subr.mxu0 0.0
    %1418 = vmatpush1.msra.mxu0 %v1369
    %1419 = vmatprep.subr.mxu0 0.0
    %1420 = vmatpush1.msra.mxu0 %v1368
    %1421 = vmatprep.subr.mxu0 0.0
    %1422 = vmatpush1.msra.mxu0 %v1367
    %1423 = vmatprep.subr.mxu0 0.0
    %1424 = vmatpush1.msra.mxu0 %v1366
    %1425 = vmatprep.subr.mxu0 0.0
    %1426 = vmatpush1.msra.mxu0 %v1365
    %1427 = vmatprep.subr.mxu0 0.0
    %1428 = vmatpush1.msra.mxu0 %v1364
    %1429 = vmatprep.subr.mxu0 0.0
    %1430 = vmatpush2.msra.mxu0 0.0
    %1431 = vmatprep.subr.mxu0 0.0
    %1432 = vmatpush2.msra.mxu0 0.0
    %1433 = vmatprep.subr.mxu0 0.0
    %1434 = vmatpush2.msra.mxu0 0.0
    %1435 = vmatprep.subr.mxu0 0.0
    %1436 = vmatpush2.msra.mxu0 0.0
    %1437 = vmatprep.subr.mxu0 0.0
    %1438 = vmatpush2.msra.mxu0 0.0
    %1439 = vmatprep.subr.mxu0 0.0
    %1440 = vmatpush2.msra.mxu0 0.0
    %1441 = vmatprep.subr.mxu0 0.0
    %1442 = vmatpush2.msra.mxu0 0.0
    %1443 = vmatprep.subr.mxu0 0.0
    %1444 = vmatpush2.msra.mxu0 0.0
    %1445 = vmatprep.subr.mxu0 0.0
    %1446 = vmatpush2.msra.mxu0 0.0
    %1447 = vmatprep.subr.mxu0 0.0
    %1448 = vmatpush2.msra.mxu0 0.0
    %1449 = vmatprep.subr.mxu0 0.0
    %1450 = vmatpush2.msra.mxu0 0.0
    %1451 = vmatprep.subr.mxu0 0.0
    %1452 = vmatpush2.msra.mxu0 0.0
    %1453 = vmatprep.subr.mxu0 0.0
    %1454 = vmatpush2.msra.mxu0 0.0
    %1455 = vmatprep.subr.mxu0 0.0
    %1456 = vmatpush2.msra.mxu0 0.0
    %1457 = vmatprep.subr.mxu0 0.0
    %1458 = vmatpush2.msra.mxu0 0.0
    %1459 = vmatprep.subr.mxu0 0.0
    %1460 = vmatpush2.msra.mxu0 0.0
    %1461 = vmatprep.mubr.f32.mxu0 0.0
    %1462 = vmatmul.mubr.f32.gmra.mxu0 %v1395
    %v1463 = vpop.f32.mrf.mxu0
    %v1464 = vadd.f32 0.0, %v1463
    %v1465 = vpop.f32.mrf.mxu0
    %1466 = vdwg.mxu0
    %1468 = vrot.lane.b32.xlu0 %v1464, 95
    %v1469 = vpop.permute.xlu0 %1468
    %1471 = vxpose.xlu0.b32.start [1/16] %v1469, 128
    %1472 = vxpose.xlu0.b32.cont [2/16] 0.0, 128
    %1473 = vxpose.xlu0.b32.cont [3/16] 0.0, 128
    %1474 = vxpose.xlu0.b32.cont [4/16] 0.0, 128
    %1475 = vxpose.xlu0.b32.cont [5/16] 0.0, 128
    %1476 = vxpose.xlu0.b32.cont [6/16] 0.0, 128
    %1477 = vxpose.xlu0.b32.cont [7/16] 0.0, 128
    %1478 = vxpose.xlu0.b32.cont [8/16] 0.0, 128
    %1479 = vxpose.xlu0.b32.cont [9/16] 0.0, 128
    %1480 = vxpose.xlu0.b32.cont [10/16] 0.0, 128
    %1481 = vxpose.xlu0.b32.cont [11/16] 0.0, 128
    %1482 = vxpose.xlu0.b32.cont [12/16] 0.0, 128
    %1483 = vxpose.xlu0.b32.cont [13/16] 0.0, 128
    %1484 = vxpose.xlu0.b32.cont [14/16] 0.0, 128
    %1485 = vxpose.xlu0.b32.cont [15/16] 0.0, 128
    %1486 = vxpose.xlu0.b32.end [16/16] 0.0, 128
    %v1487 = vpop.trf.xlu0
    %v1488 = vpop.trf.xlu0
    %v1489 = vpop.trf.xlu0
    %v1490 = vpop.trf.xlu0
    %v1491 = vpop.trf.xlu0
    %v1492 = vpop.trf.xlu0
    %v1493 = vpop.trf.xlu0
    %v1494 = vpop.trf.xlu0
    %v1495 = vpop.trf.xlu0
    %v1496 = vpop.trf.xlu0
    %v1497 = vpop.trf.xlu0
    %v1498 = vpop.trf.xlu0
    %v1499 = vpop.trf.xlu0
    %v1500 = vpop.trf.xlu0
    %v1501 = vpop.trf.xlu0
    %v1502 = vpop.trf.xlu0
    %1503 = vset.pattern.permute.xlu0 32
    %1504 = vperm.xlu0 %1503, %v1464
    %v1505 = vpop.permute.xlu0 %1504
    %v1507 = vlaneseq
    %v1508 = vshrl.u32 %v1507, 7
    %v1509 = vsub.s32 0, %v1508
    %v1510 = vrot.slane %v1487, %v1509
    %v1511 = vadd.f32 %v1505, %v1510
    %vm1512 = vcmp.ge.f32.partialorder %v1511, 0.0
    %v1513 = vmul.f32 %v1511, 0.2
    %v1514 = vsel %vm1512, %v1511, %v1513
    %v1515 = vsel %vm207, %v1514, -inf
    %1516 = vmax.xlane.f32.xlu0 %v1515
    %v1517 = vpop.xlane.xlu0 %1516
    %v1518 = vsub.f32 %v1514, %v1517
    %v1519 = vmul.f32 %v1518, 1.442695
    %v1520 = vpow.pop %v1519
    %v1521 = vsel %vm207, %v1520, 0.0
    %1522 = vadd.xlane.f32.xlu0 %v1521
    %v1523 = vpop.xlane.xlu0 %1522
    %v1524 = vrcp.pop %v1523
    %v1525 = vmul.f32 %v1520, %v1524
    %v1527 = vlaneseq
    %v1528 = vshrl.u32 %v1527, 7
    %v1529 = vsub.s32 0, %v1528
    %v1530 = vrot.slane %v1372, %v1529
    %v1533 = vsel %vm207, %v1525, 0
    %1535 = vmatprep.subr.mxu0 0.0
    %1536 = vmatpush1.msra.mxu0 0.0
    %1537 = vmatprep.subr.mxu0 0.0
    %1538 = vmatpush1.msra.mxu0 0.0
    %1539 = vmatprep.subr.mxu0 0.0
    %1540 = vmatpush1.msra.mxu0 0.0
    %1541 = vmatprep.subr.mxu0 0.0
    %1542 = vmatpush1.msra.mxu0 0.0
    %1543 = vmatprep.subr.mxu0 0.0
    %1544 = vmatpush1.msra.mxu0 0.0
    %1545 = vmatprep.subr.mxu0 0.0
    %1546 = vmatpush1.msra.mxu0 0.0
    %1547 = vmatprep.subr.mxu0 0.0
    %1548 = vmatpush1.msra.mxu0 0.0
    %1549 = vmatprep.subr.mxu0 0.0
    %1550 = vmatpush1.msra.mxu0 0.0
    %1551 = vmatprep.subr.mxu0 0.0
    %1552 = vmatpush1.msra.mxu0 0.0
    %1553 = vmatprep.subr.mxu0 0.0
    %1554 = vmatpush1.msra.mxu0 0.0
    %1555 = vmatprep.subr.mxu0 0.0
    %1556 = vmatpush1.msra.mxu0 0.0
    %1557 = vmatprep.subr.mxu0 0.0
    %1558 = vmatpush1.msra.mxu0 0.0
    %1559 = vmatprep.subr.mxu0 0.0
    %1560 = vmatpush1.msra.mxu0 0.0
    %1561 = vmatprep.subr.mxu0 0.0
    %1562 = vmatpush1.msra.mxu0 0.0
    %1563 = vmatprep.subr.mxu0 0.0
    %1564 = vmatpush1.msra.mxu0 0.0
    %1565 = vmatprep.subr.mxu0 0.0
    %1566 = vmatpush1.msra.mxu0 %v1464
    %1567 = vmatprep.subr.mxu0 0.0
    %1568 = vmatpush2.msra.mxu0 0.0
    %1569 = vmatprep.subr.mxu0 0.0
    %1570 = vmatpush2.msra.mxu0 0.0
    %1571 = vmatprep.subr.mxu0 0.0
    %1572 = vmatpush2.msra.mxu0 0.0
    %1573 = vmatprep.subr.mxu0 0.0
    %1574 = vmatpush2.msra.mxu0 0.0
    %1575 = vmatprep.subr.mxu0 0.0
    %1576 = vmatpush2.msra.mxu0 0.0
    %1577 = vmatprep.subr.mxu0 0.0
    %1578 = vmatpush2.msra.mxu0 0.0
    %1579 = vmatprep.subr.mxu0 0.0
    %1580 = vmatpush2.msra.mxu0 0.0
    %1581 = vmatprep.subr.mxu0 0.0
    %1582 = vmatpush2.msra.mxu0 0.0
    %1583 = vmatprep.subr.mxu0 0.0
    %1584 = vmatpush2.msra.mxu0 0.0
    %1585 = vmatprep.subr.mxu0 0.0
    %1586 = vmatpush2.msra.mxu0 0.0
    %1587 = vmatprep.subr.mxu0 0.0
    %1588 = vmatpush2.msra.mxu0 0.0
    %1589 = vmatprep.subr.mxu0 0.0
    %1590 = vmatpush2.msra.mxu0 0.0
    %1591 = vmatprep.subr.mxu0 0.0
    %1592 = vmatpush2.msra.mxu0 0.0
    %1593 = vmatprep.subr.mxu0 0.0
    %1594 = vmatpush2.msra.mxu0 0.0
    %1595 = vmatprep.subr.mxu0 0.0
    %1596 = vmatpush2.msra.mxu0 0.0
    %1597 = vmatprep.subr.mxu0 0.0
    %1598 = vmatpush2.msra.mxu0 0.0
    %1599 = vmatprep.mubr.f32.mxu0 0.0
    %1600 = vmatmul.mubr.f32.gmra.mxu0 %v1533
    %v1601 = vpop.f32.mrf.mxu0
    %v1602 = vadd.f32 %v1530, %v1601
    %v1603 = vpop.f32.mrf.mxu0
    %1604 = vdwg.mxu0
    %s1605 = scalar_lea.vmem [#allocation2], 8
    %1606 = vst.msk [vmem:[%s1605] sm:$0xff] %vm27, %v1602
    // Predicated region
    $region22: #{tpu_custom_call.1} parent=1 // pred_check
      _
    $region23: #{tpu_custom_call.1} parent=1 // pred_check_branch
      %1608 = sbr.rel (0) target = $region25
    $region24: #{tpu_custom_call.1} parent=1 // pred_region
      %s1610 = ssub.s32 256, 256
      %1611 = vsyncadd [#allocation3], %s1610
      %s1612 = sshll.u32 [#allocation2], 4
      %s1613 = int_to_ptr.vmem [resolvable:$true] %s1612
      %1618 = dma.vmem_to_hbm [thread:$0]  %s1613, 256, %s5, [#allocation3], 128, 128, 8
    $region25: #{tpu_custom_call.1} parent=1 // pred_fallthru
      _
    // Predicated region
    $region26: #{tpu_custom_call.1} parent=1 // pred_check
      _
    $region27: #{tpu_custom_call.1} parent=1 // pred_check_branch
      %1620 = sbr.rel (0) target = $region29
    $region28: #{tpu_custom_call.1} parent=1 // pred_region
      %1621 = dma.done [#allocation3], 256
    $region29: #{tpu_custom_call.1} parent=1 // pred_fallthru
      _
    %1622 = vsyncpa [#allocation3], 1

</llo_original>
